<compile_context>
chip_gen: v5e
topology: v5e:2x2
jax: 0.10.0
libtpu: 0.0.40
codegen_flags: <defaults>
</compile_context>

<pallas_src>
import functools

import jax
import jax.numpy as jnp
from jax.experimental import pallas as pl
from jax.experimental.pallas import tpu as pltpu


# ----------------------------------------------------------------------------
# Kernel
# ----------------------------------------------------------------------------
def mhsa_kernel(x_ref, wqkv_ref, bqkv_ref, wo_ref, bo_ref, o_ref, *,
                num_heads, head_dim, block_batch, seq_len):
    embed = num_heads * head_dim
    rows = block_batch * seq_len

    # ---- fused Q/K/V projection: one (rows, E) @ (E, 3E) bf16 MXU matmul ---
    # (the softmax scale is already folded into the q columns of wqkv/bqkv)
    qkv = jnp.dot(x_ref[...], wqkv_ref[...],
                  preferred_element_type=jnp.float32) + bqkv_ref[...]

    out_acc = jnp.zeros((rows, embed), jnp.float32)

    # ---- per-head attention, batched over the batch block -------------------
    for h in range(num_heads):
        def head_slice(base, _h=h):
            col0 = base + _h * head_dim
            return (qkv[:, col0:col0 + head_dim]
                    .reshape(block_batch, seq_len, head_dim)
                    .astype(jnp.bfloat16))

        qh = head_slice(0)              # (bblk, S, Dh), scale pre-folded
        kh = head_slice(embed)
        vh = head_slice(2 * embed)

        # 'bqd,bkd->bqk' — contract Dh, batch over bblk (no explicit kh.T).
        scores = jax.lax.dot_general(
            qh, kh, dimension_numbers=(((2,), (2,)), ((0,), (0,))),
            preferred_element_type=jnp.float32)          # (bblk, S, S) f32

        # Numerically stable softmax; reciprocal on the EUP slot.
        m = jnp.max(scores, axis=-1, keepdims=True)
        e = jnp.exp(scores - m)
        denom = jnp.sum(e, axis=-1, keepdims=True)
        attn = (e * pl.reciprocal(denom, approx=True)).astype(jnp.bfloat16)

        # 'bqk,bkd->bqd'
        ctx_h = jax.lax.dot_general(
            attn, vh, dimension_numbers=(((2,), (1,)), ((0,), (0,))),
            preferred_element_type=jnp.float32)          # (bblk, S, Dh)

        # Per-head slice of fc_out accumulated into an f32 value: no ctx
        # scratch round-trip, no masked partial-lane stores.  wo is pre-split
        # to (H, Dh, E) so this is a static leading-dim index.
        ctx2d = ctx_h.reshape(rows, head_dim).astype(jnp.bfloat16)
        out_acc = out_acc + jnp.dot(ctx2d, wo_ref[h],
                                    preferred_element_type=jnp.float32)

    o_ref[...] = (out_acc + bo_ref[...]).astype(o_ref.dtype)


# ----------------------------------------------------------------------------
# Sizing helpers
# ----------------------------------------------------------------------------
def _vmem_capacity_bytes():
    try:
        return int(pltpu.get_tpu_info().vmem_capacity_bytes)
    except Exception:
        return 64 * 1024 * 1024          # conservative default (v7x per-TC)


def _estimate_vmem_bytes(block_batch, seq, embed, out_itemsize):
    rows = block_batch * seq
    x_slab = 2 * rows * embed * 2                       # bf16 input, 2 buffers
    out_slab = 2 * rows * embed * out_itemsize          # output, 2 buffers
    weights = (3 * embed * embed + embed * embed) * 2   # bf16, single-buffered
    biases = (3 * embed + embed) * 4                    # f32
    qkv_live = rows * 3 * embed * 4                     # f32 fused projection
    scores_live = 2 * block_batch * seq * seq * 4       # f32 scores + exp
    acc_live = rows * embed * 4                         # f32 fc_out accumulator
    return (x_slab + out_slab + weights + biases
            + qkv_live + scores_live + acc_live)


def _pick_block_batch(batch, seq, embed, out_itemsize, budget_bytes):
    """Largest batch block that (a) divides `batch`, (b) keeps the row slab
    sublane-tileable (rows % 8 == 0 unless it spans the whole batch axis),
    (c) fits the VMEM byte budget, and (d) leaves >= 2 grid steps when
    batch >= 2 so both v7x TensorCores get work from the parallel grid axis."""
    valid = [c for c in range(1, batch + 1)
             if batch % c == 0 and ((c * seq) % 8 == 0 or c == batch)]
    in_budget = [c for c in valid
                 if _estimate_vmem_bytes(c, seq, embed, out_itemsize)
                 <= budget_bytes]
    cands = in_budget or valid[:1]
    if batch >= 2:
        cands = [c for c in cands if batch // c >= 2] or cands
    return max(cands)


# ----------------------------------------------------------------------------
# Wrapper
# ----------------------------------------------------------------------------
def multi_head_self_attention(x, params, num_heads):
    B, S, E = x.shape
    head_dim = E // num_heads
    scale = float(head_dim) ** (-0.5)
    wq, bq, wk, bk, wv, bv, wo, bo = params

    # Fold the softmax scale into the q projection (exact:
    # (x@wq*s + bq*s)·k == ((x@wq + bq)·k)*s), fuse QKV weights once, and cast
    # MXU operands to bf16 (accumulation stays f32 inside the kernel).
    w_qkv = jnp.concatenate([wq * scale, wk, wv], axis=1).astype(jnp.bfloat16)
    b_qkv = jnp.concatenate([bq * scale, bk, bv], axis=1).astype(jnp.float32)
    wo3 = wo.reshape(num_heads, head_dim, E).astype(jnp.bfloat16)
    bo_f32 = bo.astype(jnp.float32)
    x2d = x.reshape(B * S, E).astype(jnp.bfloat16)

    out_itemsize = x.dtype.itemsize
    capacity = _vmem_capacity_bytes()
    block_batch = _pick_block_batch(B, S, E, out_itemsize,
                                    budget_bytes=int(capacity * 0.6))
    rows = block_batch * S
    grid = (B // block_batch,)
    est = _estimate_vmem_bytes(block_batch, S, E, out_itemsize)
    vmem_limit = int(min(capacity * 7 // 8,
                         max(2 * est, 32 * 1024 * 1024)))

    kernel = functools.partial(
        mhsa_kernel, num_heads=num_heads, head_dim=head_dim,
        block_batch=block_batch, seq_len=S)

    flops = (2 * B * S * E * 3 * E                       # fused QKV projection
             + 4 * B * num_heads * S * S * head_dim      # scores + context
             + 2 * B * S * E * E)                        # fc_out
    transcendentals = B * num_heads * S * S              # exp in softmax
    bytes_accessed = (B * S * E * 2 + B * S * E * out_itemsize
                      + (3 * E * E + E * E) * 2 + (3 * E + E) * 4)
    cost = pl.CostEstimate(flops=int(flops),
                           transcendentals=int(transcendentals),
                           bytes_accessed=int(bytes_accessed))

    def build(single_buffer_weights):
        # Grid-constant weight/bias blocks: single-buffer them so the
        # pipeline does not hold two copies of (E,3E)+(H,Dh,E) in VMEM.
        wmode = ({"pipeline_mode": pl.Buffered(1)}
                 if single_buffer_weights else {})
        return pl.pallas_call(
            kernel,
            out_shape=jax.ShapeDtypeStruct((B * S, E), x.dtype),
            grid_spec=pltpu.PrefetchScalarGridSpec(
                num_scalar_prefetch=0,
                grid=grid,
                in_specs=[
                    pl.BlockSpec((rows, E), lambda i: (i, 0)),       # x rows
                    pl.BlockSpec((E, 3 * E), lambda i: (0, 0), **wmode),
                    pl.BlockSpec((1, 3 * E), lambda i: (0, 0), **wmode),
                    pl.BlockSpec((num_heads, head_dim, E),
                                 lambda i: (0, 0, 0), **wmode),
                    pl.BlockSpec((1, E), lambda i: (0, 0), **wmode),
                ],
                out_specs=pl.BlockSpec((rows, E), lambda i: (i, 0)),
            ),
            compiler_params=pltpu.CompilerParams(
                dimension_semantics=("parallel",),
                vmem_limit_bytes=vmem_limit),
            cost_estimate=cost,
        )

    args = (x2d, w_qkv, b_qkv, wo3, bo_f32)
    try:
        out2d = jax.block_until_ready(build(single_buffer_weights=True)(*args))
    except Exception:
        # Fallback for toolchains where pipeline_mode=pl.Buffered(1) on the
        # grid-constant blocks does not lower; only costs extra weight VMEM.
        out2d = build(single_buffer_weights=False)(*args)
    return out2d.reshape(B, S, E)


# ----------------------------------------------------------------------------
# Plain-JAX reference (mirrors the PyTorch forward, f32 throughout)
# ----------------------------------------------------------------------------
def mhsa_reference(x, params, num_heads):
    B, S, E = x.shape
    head_dim = E // num_heads
    scale = float(head_dim) ** (-0.5)
    wq, bq, wk, bk, wv, bv, wo, bo = params

    q = x @ wq + bq[0]
    k = x @ wk + bk[0]
    v = x @ wv + bv[0]
    q = q.reshape(B, S, num_heads, head_dim).transpose(0, 2, 1, 3)
    k = k.reshape(B, S, num_heads, head_dim).transpose(0, 2, 1, 3)
    v = v.reshape(B, S, num_heads, head_dim).transpose(0, 2, 1, 3)
    scores = jnp.einsum("bhqd,bhkd->bhqk", q, k) * scale
    attn = jax.nn.softmax(scores, axis=-1)
    out = jnp.einsum("bhqk,bhkd->bhqd", attn, v)
    out = out.transpose(0, 2, 1, 3).reshape(B, S, E)
    return out @ wo + bo[0]


if __name__ == "__main__":
    B, S, E, H = 2, 8, 32, 4

    key = jax.random.PRNGKey(0)
    keys = jax.random.split(key, 9)
    x = jax.random.normal(keys[0], (B, S, E), dtype=jnp.float32)

    # Deterministic parameter init (nn.Linear-like uniform scale).
    bound = 1.0 / (E ** 0.5)

    def init_w(k):
        return jax.random.uniform(k, (E, E), jnp.float32, -bound, bound)

    def init_b(k):
        return jax.random.uniform(k, (1, E), jnp.float32, -bound, bound)

    params = (init_w(keys[1]), init_b(keys[2]),   # query
              init_w(keys[3]), init_b(keys[4]),   # key
              init_w(keys[5]), init_b(keys[6]),   # value
              init_w(keys[7]), init_b(keys[8]))   # fc_out

    out = multi_head_self_attention(x, params, H)
    out = jax.block_until_ready(out)

    ref = mhsa_reference(x, params, H)
    assert out.shape == (B, S, E)
    # Tolerance reflects bf16 MXU operands (f32 accumulation) plus the EUP
    # approximate reciprocal in the softmax denominator.
    max_err = jnp.max(jnp.abs(out - ref))
    assert jnp.allclose(out, ref, atol=3e-2, rtol=3e-2), (
        f"max abs err {max_err}")

    print("KERNEL_OK")
</pallas_src>

<mosaic_0001>
module attributes {stable_mosaic.version = 11 : i64} {
  func.func @mhsa_kernel(%arg0: i32, %arg1: memref<8x32xbf16, #tpu.memory_space<vmem>>, %arg2: memref<32x96xbf16, #tpu.memory_space<vmem>>, %arg3: memref<1x96xf32, #tpu.memory_space<vmem>>, %arg4: memref<4x8x32xbf16, #tpu.memory_space<vmem>>, %arg5: memref<1x32xf32, #tpu.memory_space<vmem>>, %arg6: memref<8x32xf32, #tpu.memory_space<vmem>>) attributes {dimension_semantics = [#tpu.dimension_semantics<parallel>], iteration_bounds = array<i64: 2>, scalar_prefetch = 0 : i64, scratch_operands = 0 : i64, tpu.core_type = #tpu.core_type<tc>, window_params = [{transform_indices = @transform_0, window_bounds = array<i64: 8, 32>}, {pipeline_mode = #tpu.pipeline_mode<synchronous>, transform_indices = @transform_1, window_bounds = array<i64: 32, 96>}, {pipeline_mode = #tpu.pipeline_mode<synchronous>, transform_indices = @transform_2, window_bounds = array<i64: 1, 96>}, {pipeline_mode = #tpu.pipeline_mode<synchronous>, transform_indices = @transform_3, window_bounds = array<i64: 4, 8, 32>}, {pipeline_mode = #tpu.pipeline_mode<synchronous>, transform_indices = @transform_4, window_bounds = array<i64: 1, 32>}, {transform_indices = @transform_5, window_bounds = array<i64: 8, 32>}]} {
    %c0 = arith.constant 0 : index
    %c0_0 = arith.constant 0 : index
    %0 = vector.load %arg1[%c0, %c0_0] : memref<8x32xbf16, #tpu.memory_space<vmem>>, vector<8x32xbf16>
    %c0_1 = arith.constant 0 : index
    %c0_2 = arith.constant 0 : index
    %1 = vector.load %arg2[%c0_1, %c0_2] : memref<32x96xbf16, #tpu.memory_space<vmem>>, vector<32x96xbf16>
    %cst = arith.constant dense<0.000000e+00> : vector<8x96xf32>
    %2 = tpu.matmul %0, %1, %cst {dimension_numbers = #tpu.dot_dimension_numbers<[1], [0], [0], [1], [0, 0, 1, 1], [], []>} : vector<8x32xbf16>, vector<32x96xbf16>, vector<8x96xf32> -> vector<8x96xf32>
    %c0_3 = arith.constant 0 : index
    %c0_4 = arith.constant 0 : index
    %3 = vector.load %arg3[%c0_3, %c0_4] : memref<1x96xf32, #tpu.memory_space<vmem>>, vector<1x96xf32>
    %4 = vector.broadcast %3 : vector<1x96xf32> to vector<8x96xf32>
    %5 = arith.addf %2, %4 : vector<8x96xf32>
    %cst_5 = arith.constant 0.000000e+00 : f32
    %6 = vector.broadcast %cst_5 : f32 to vector<8x32xf32>
    %7 = vector.extract_strided_slice %5 {offsets = [0, 0], sizes = [8, 8], strides = [1, 1]} : vector<8x96xf32> to vector<8x8xf32>
    %8 = vector.shape_cast %7 : vector<8x8xf32> to vector<1x8x8xf32>
    %9 = arith.truncf %8 : vector<1x8x8xf32> to vector<1x8x8xbf16>
    %10 = vector.extract_strided_slice %5 {offsets = [0, 32], sizes = [8, 8], strides = [1, 1]} : vector<8x96xf32> to vector<8x8xf32>
    %11 = vector.shape_cast %10 : vector<8x8xf32> to vector<1x8x8xf32>
    %12 = arith.truncf %11 : vector<1x8x8xf32> to vector<1x8x8xbf16>
    %13 = vector.extract_strided_slice %5 {offsets = [0, 64], sizes = [8, 8], strides = [1, 1]} : vector<8x96xf32> to vector<8x8xf32>
    %14 = vector.shape_cast %13 : vector<8x8xf32> to vector<1x8x8xf32>
    %15 = arith.truncf %14 : vector<1x8x8xf32> to vector<1x8x8xbf16>
    %cst_6 = arith.constant dense<0.000000e+00> : vector<1x8x8xf32>
    %16 = tpu.matmul %9, %12, %cst_6 {dimension_numbers = #tpu.dot_dimension_numbers<[2], [2], [1], [1], [0, 0, 0, 1, 1, 1], [0], [0]>} : vector<1x8x8xbf16>, vector<1x8x8xbf16>, vector<1x8x8xf32> -> vector<1x8x8xf32>
    %cst_7 = arith.constant dense<0xFF800000> : vector<1x8xf32>
    %17 = vector.multi_reduction <maximumf>, %16, %cst_7 [2] : vector<1x8x8xf32> to vector<1x8xf32>
    %18 = vector.shape_cast %17 : vector<1x8xf32> to vector<1x8x1xf32>
    %19 = vector.broadcast %18 : vector<1x8x1xf32> to vector<1x8x8xf32>
    %20 = arith.subf %16, %19 : vector<1x8x8xf32>
    %21 = math.exp %20 : vector<1x8x8xf32>
    %cst_8 = arith.constant dense<0.000000e+00> : vector<1x8xf32>
    %22 = vector.multi_reduction <add>, %21, %cst_8 [2] : vector<1x8x8xf32> to vector<1x8xf32>
    %23 = vector.shape_cast %22 : vector<1x8xf32> to vector<1x8x1xf32>
    %24 = tpu.reciprocal %23 {approx = true} : vector<1x8x1xf32> -> vector<1x8x1xf32>
    %25 = vector.broadcast %24 : vector<1x8x1xf32> to vector<1x8x8xf32>
    %26 = arith.mulf %21, %25 : vector<1x8x8xf32>
    %27 = arith.truncf %26 : vector<1x8x8xf32> to vector<1x8x8xbf16>
    %cst_9 = arith.constant dense<0.000000e+00> : vector<1x8x8xf32>
    %28 = tpu.matmul %27, %15, %cst_9 {dimension_numbers = #tpu.dot_dimension_numbers<[2], [1], [1], [2], [0, 0, 0, 1, 1, 2], [0], [0]>} : vector<1x8x8xbf16>, vector<1x8x8xbf16>, vector<1x8x8xf32> -> vector<1x8x8xf32>
    %29 = vector.shape_cast %28 : vector<1x8x8xf32> to vector<8x8xf32>
    %30 = arith.truncf %29 : vector<8x8xf32> to vector<8x8xbf16>
    %c0_10 = arith.constant 0 : index
    %c0_11 = arith.constant 0 : index
    %c0_12 = arith.constant 0 : index
    %31 = vector.load %arg4[%c0_10, %c0_11, %c0_12] : memref<4x8x32xbf16, #tpu.memory_space<vmem>>, vector<1x8x32xbf16>
    %32 = vector.shape_cast %31 : vector<1x8x32xbf16> to vector<8x32xbf16>
    %cst_13 = arith.constant dense<0.000000e+00> : vector<8x32xf32>
    %33 = tpu.matmul %30, %32, %cst_13 {dimension_numbers = #tpu.dot_dimension_numbers<[1], [0], [0], [1], [0, 0, 1, 1], [], []>} : vector<8x8xbf16>, vector<8x32xbf16>, vector<8x32xf32> -> vector<8x32xf32>
    %34 = arith.addf %6, %33 : vector<8x32xf32>
    %35 = vector.extract_strided_slice %5 {offsets = [0, 8], sizes = [8, 8], strides = [1, 1]} : vector<8x96xf32> to vector<8x8xf32>
    %36 = vector.shape_cast %35 : vector<8x8xf32> to vector<1x8x8xf32>
    %37 = arith.truncf %36 : vector<1x8x8xf32> to vector<1x8x8xbf16>
    %38 = vector.extract_strided_slice %5 {offsets = [0, 40], sizes = [8, 8], strides = [1, 1]} : vector<8x96xf32> to vector<8x8xf32>
    %39 = vector.shape_cast %38 : vector<8x8xf32> to vector<1x8x8xf32>
    %40 = arith.truncf %39 : vector<1x8x8xf32> to vector<1x8x8xbf16>
    %41 = vector.extract_strided_slice %5 {offsets = [0, 72], sizes = [8, 8], strides = [1, 1]} : vector<8x96xf32> to vector<8x8xf32>
    %42 = vector.shape_cast %41 : vector<8x8xf32> to vector<1x8x8xf32>
    %43 = arith.truncf %42 : vector<1x8x8xf32> to vector<1x8x8xbf16>
    %cst_14 = arith.constant dense<0.000000e+00> : vector<1x8x8xf32>
    %44 = tpu.matmul %37, %40, %cst_14 {dimension_numbers = #tpu.dot_dimension_numbers<[2], [2], [1], [1], [0, 0, 0, 1, 1, 1], [0], [0]>} : vector<1x8x8xbf16>, vector<1x8x8xbf16>, vector<1x8x8xf32> -> vector<1x8x8xf32>
    %cst_15 = arith.constant dense<0xFF800000> : vector<1x8xf32>
    %45 = vector.multi_reduction <maximumf>, %44, %cst_15 [2] : vector<1x8x8xf32> to vector<1x8xf32>
    %46 = vector.shape_cast %45 : vector<1x8xf32> to vector<1x8x1xf32>
    %47 = vector.broadcast %46 : vector<1x8x1xf32> to vector<1x8x8xf32>
    %48 = arith.subf %44, %47 : vector<1x8x8xf32>
    %49 = math.exp %48 : vector<1x8x8xf32>
    %cst_16 = arith.constant dense<0.000000e+00> : vector<1x8xf32>
    %50 = vector.multi_reduction <add>, %49, %cst_16 [2] : vector<1x8x8xf32> to vector<1x8xf32>
    %51 = vector.shape_cast %50 : vector<1x8xf32> to vector<1x8x1xf32>
    %52 = tpu.reciprocal %51 {approx = true} : vector<1x8x1xf32> -> vector<1x8x1xf32>
    %53 = vector.broadcast %52 : vector<1x8x1xf32> to vector<1x8x8xf32>
    %54 = arith.mulf %49, %53 : vector<1x8x8xf32>
    %55 = arith.truncf %54 : vector<1x8x8xf32> to vector<1x8x8xbf16>
    %cst_17 = arith.constant dense<0.000000e+00> : vector<1x8x8xf32>
    %56 = tpu.matmul %55, %43, %cst_17 {dimension_numbers = #tpu.dot_dimension_numbers<[2], [1], [1], [2], [0, 0, 0, 1, 1, 2], [0], [0]>} : vector<1x8x8xbf16>, vector<1x8x8xbf16>, vector<1x8x8xf32> -> vector<1x8x8xf32>
    %57 = vector.shape_cast %56 : vector<1x8x8xf32> to vector<8x8xf32>
    %58 = arith.truncf %57 : vector<8x8xf32> to vector<8x8xbf16>
    %c1 = arith.constant 1 : index
    %c0_18 = arith.constant 0 : index
    %c0_19 = arith.constant 0 : index
    %59 = vector.load %arg4[%c1, %c0_18, %c0_19] : memref<4x8x32xbf16, #tpu.memory_space<vmem>>, vector<1x8x32xbf16>
    %60 = vector.shape_cast %59 : vector<1x8x32xbf16> to vector<8x32xbf16>
    %cst_20 = arith.constant dense<0.000000e+00> : vector<8x32xf32>
    %61 = tpu.matmul %58, %60, %cst_20 {dimension_numbers = #tpu.dot_dimension_numbers<[1], [0], [0], [1], [0, 0, 1, 1], [], []>} : vector<8x8xbf16>, vector<8x32xbf16>, vector<8x32xf32> -> vector<8x32xf32>
    %62 = arith.addf %34, %61 : vector<8x32xf32>
    %63 = vector.extract_strided_slice %5 {offsets = [0, 16], sizes = [8, 8], strides = [1, 1]} : vector<8x96xf32> to vector<8x8xf32>
    %64 = vector.shape_cast %63 : vector<8x8xf32> to vector<1x8x8xf32>
    %65 = arith.truncf %64 : vector<1x8x8xf32> to vector<1x8x8xbf16>
    %66 = vector.extract_strided_slice %5 {offsets = [0, 48], sizes = [8, 8], strides = [1, 1]} : vector<8x96xf32> to vector<8x8xf32>
    %67 = vector.shape_cast %66 : vector<8x8xf32> to vector<1x8x8xf32>
    %68 = arith.truncf %67 : vector<1x8x8xf32> to vector<1x8x8xbf16>
    %69 = vector.extract_strided_slice %5 {offsets = [0, 80], sizes = [8, 8], strides = [1, 1]} : vector<8x96xf32> to vector<8x8xf32>
    %70 = vector.shape_cast %69 : vector<8x8xf32> to vector<1x8x8xf32>
    %71 = arith.truncf %70 : vector<1x8x8xf32> to vector<1x8x8xbf16>
    %cst_21 = arith.constant dense<0.000000e+00> : vector<1x8x8xf32>
    %72 = tpu.matmul %65, %68, %cst_21 {dimension_numbers = #tpu.dot_dimension_numbers<[2], [2], [1], [1], [0, 0, 0, 1, 1, 1], [0], [0]>} : vector<1x8x8xbf16>, vector<1x8x8xbf16>, vector<1x8x8xf32> -> vector<1x8x8xf32>
    %cst_22 = arith.constant dense<0xFF800000> : vector<1x8xf32>
    %73 = vector.multi_reduction <maximumf>, %72, %cst_22 [2] : vector<1x8x8xf32> to vector<1x8xf32>
    %74 = vector.shape_cast %73 : vector<1x8xf32> to vector<1x8x1xf32>
    %75 = vector.broadcast %74 : vector<1x8x1xf32> to vector<1x8x8xf32>
    %76 = arith.subf %72, %75 : vector<1x8x8xf32>
    %77 = math.exp %76 : vector<1x8x8xf32>
    %cst_23 = arith.constant dense<0.000000e+00> : vector<1x8xf32>
    %78 = vector.multi_reduction <add>, %77, %cst_23 [2] : vector<1x8x8xf32> to vector<1x8xf32>
    %79 = vector.shape_cast %78 : vector<1x8xf32> to vector<1x8x1xf32>
    %80 = tpu.reciprocal %79 {approx = true} : vector<1x8x1xf32> -> vector<1x8x1xf32>
    %81 = vector.broadcast %80 : vector<1x8x1xf32> to vector<1x8x8xf32>
    %82 = arith.mulf %77, %81 : vector<1x8x8xf32>
    %83 = arith.truncf %82 : vector<1x8x8xf32> to vector<1x8x8xbf16>
    %cst_24 = arith.constant dense<0.000000e+00> : vector<1x8x8xf32>
    %84 = tpu.matmul %83, %71, %cst_24 {dimension_numbers = #tpu.dot_dimension_numbers<[2], [1], [1], [2], [0, 0, 0, 1, 1, 2], [0], [0]>} : vector<1x8x8xbf16>, vector<1x8x8xbf16>, vector<1x8x8xf32> -> vector<1x8x8xf32>
    %85 = vector.shape_cast %84 : vector<1x8x8xf32> to vector<8x8xf32>
    %86 = arith.truncf %85 : vector<8x8xf32> to vector<8x8xbf16>
    %c2 = arith.constant 2 : index
    %c0_25 = arith.constant 0 : index
    %c0_26 = arith.constant 0 : index
    %87 = vector.load %arg4[%c2, %c0_25, %c0_26] : memref<4x8x32xbf16, #tpu.memory_space<vmem>>, vector<1x8x32xbf16>
    %88 = vector.shape_cast %87 : vector<1x8x32xbf16> to vector<8x32xbf16>
    %cst_27 = arith.constant dense<0.000000e+00> : vector<8x32xf32>
    %89 = tpu.matmul %86, %88, %cst_27 {dimension_numbers = #tpu.dot_dimension_numbers<[1], [0], [0], [1], [0, 0, 1, 1], [], []>} : vector<8x8xbf16>, vector<8x32xbf16>, vector<8x32xf32> -> vector<8x32xf32>
    %90 = arith.addf %62, %89 : vector<8x32xf32>
    %91 = vector.extract_strided_slice %5 {offsets = [0, 24], sizes = [8, 8], strides = [1, 1]} : vector<8x96xf32> to vector<8x8xf32>
    %92 = vector.shape_cast %91 : vector<8x8xf32> to vector<1x8x8xf32>
    %93 = arith.truncf %92 : vector<1x8x8xf32> to vector<1x8x8xbf16>
    %94 = vector.extract_strided_slice %5 {offsets = [0, 56], sizes = [8, 8], strides = [1, 1]} : vector<8x96xf32> to vector<8x8xf32>
    %95 = vector.shape_cast %94 : vector<8x8xf32> to vector<1x8x8xf32>
    %96 = arith.truncf %95 : vector<1x8x8xf32> to vector<1x8x8xbf16>
    %97 = vector.extract_strided_slice %5 {offsets = [0, 88], sizes = [8, 8], strides = [1, 1]} : vector<8x96xf32> to vector<8x8xf32>
    %98 = vector.shape_cast %97 : vector<8x8xf32> to vector<1x8x8xf32>
    %99 = arith.truncf %98 : vector<1x8x8xf32> to vector<1x8x8xbf16>
    %cst_28 = arith.constant dense<0.000000e+00> : vector<1x8x8xf32>
    %100 = tpu.matmul %93, %96, %cst_28 {dimension_numbers = #tpu.dot_dimension_numbers<[2], [2], [1], [1], [0, 0, 0, 1, 1, 1], [0], [0]>} : vector<1x8x8xbf16>, vector<1x8x8xbf16>, vector<1x8x8xf32> -> vector<1x8x8xf32>
    %cst_29 = arith.constant dense<0xFF800000> : vector<1x8xf32>
    %101 = vector.multi_reduction <maximumf>, %100, %cst_29 [2] : vector<1x8x8xf32> to vector<1x8xf32>
    %102 = vector.shape_cast %101 : vector<1x8xf32> to vector<1x8x1xf32>
    %103 = vector.broadcast %102 : vector<1x8x1xf32> to vector<1x8x8xf32>
    %104 = arith.subf %100, %103 : vector<1x8x8xf32>
    %105 = math.exp %104 : vector<1x8x8xf32>
    %cst_30 = arith.constant dense<0.000000e+00> : vector<1x8xf32>
    %106 = vector.multi_reduction <add>, %105, %cst_30 [2] : vector<1x8x8xf32> to vector<1x8xf32>
    %107 = vector.shape_cast %106 : vector<1x8xf32> to vector<1x8x1xf32>
    %108 = tpu.reciprocal %107 {approx = true} : vector<1x8x1xf32> -> vector<1x8x1xf32>
    %109 = vector.broadcast %108 : vector<1x8x1xf32> to vector<1x8x8xf32>
    %110 = arith.mulf %105, %109 : vector<1x8x8xf32>
    %111 = arith.truncf %110 : vector<1x8x8xf32> to vector<1x8x8xbf16>
    %cst_31 = arith.constant dense<0.000000e+00> : vector<1x8x8xf32>
    %112 = tpu.matmul %111, %99, %cst_31 {dimension_numbers = #tpu.dot_dimension_numbers<[2], [1], [1], [2], [0, 0, 0, 1, 1, 2], [0], [0]>} : vector<1x8x8xbf16>, vector<1x8x8xbf16>, vector<1x8x8xf32> -> vector<1x8x8xf32>
    %113 = vector.shape_cast %112 : vector<1x8x8xf32> to vector<8x8xf32>
    %114 = arith.truncf %113 : vector<8x8xf32> to vector<8x8xbf16>
    %c3 = arith.constant 3 : index
    %c0_32 = arith.constant 0 : index
    %c0_33 = arith.constant 0 : index
    %115 = vector.load %arg4[%c3, %c0_32, %c0_33] : memref<4x8x32xbf16, #tpu.memory_space<vmem>>, vector<1x8x32xbf16>
    %116 = vector.shape_cast %115 : vector<1x8x32xbf16> to vector<8x32xbf16>
    %cst_34 = arith.constant dense<0.000000e+00> : vector<8x32xf32>
    %117 = tpu.matmul %114, %116, %cst_34 {dimension_numbers = #tpu.dot_dimension_numbers<[1], [0], [0], [1], [0, 0, 1, 1], [], []>} : vector<8x8xbf16>, vector<8x32xbf16>, vector<8x32xf32> -> vector<8x32xf32>
    %118 = arith.addf %90, %117 : vector<8x32xf32>
    %c0_35 = arith.constant 0 : index
    %c0_36 = arith.constant 0 : index
    %119 = vector.load %arg5[%c0_35, %c0_36] : memref<1x32xf32, #tpu.memory_space<vmem>>, vector<1x32xf32>
    %120 = vector.broadcast %119 : vector<1x32xf32> to vector<8x32xf32>
    %121 = arith.addf %118, %120 : vector<8x32xf32>
    %c0_37 = arith.constant 0 : index
    %c0_38 = arith.constant 0 : index
    %122 = vector.load %arg6[%c0_37, %c0_38] : memref<8x32xf32, #tpu.memory_space<vmem>>, vector<8x32xf32>
    tpu.vector_store %arg6[%c0_37, %c0_38], %121 {strides = array<i32>} : memref<8x32xf32, #tpu.memory_space<vmem>>, vector<8x32xf32>,
    return
  }
  func.func @transform_0(%arg0: i32) -> (i32, i32) {
    %c0_i32 = arith.constant 0 : i32
    %c0_i32_0 = arith.constant 0 : i32
    return %arg0, %c0_i32 : i32, i32
  }
  func.func @transform_1(%arg0: i32) -> (i32, i32) {
    %c0_i32 = arith.constant 0 : i32
    %c0_i32_0 = arith.constant 0 : i32
    %c0_i32_1 = arith.constant 0 : i32
    return %c0_i32, %c0_i32_0 : i32, i32
  }
  func.func @transform_2(%arg0: i32) -> (i32, i32) {
    %c0_i32 = arith.constant 0 : i32
    %c0_i32_0 = arith.constant 0 : i32
    %c0_i32_1 = arith.constant 0 : i32
    return %c0_i32, %c0_i32_0 : i32, i32
  }
  func.func @transform_3(%arg0: i32) -> (i32, i32, i32) {
    %c0_i32 = arith.constant 0 : i32
    %c0_i32_0 = arith.constant 0 : i32
    %c0_i32_1 = arith.constant 0 : i32
    %c0_i32_2 = arith.constant 0 : i32
    return %c0_i32, %c0_i32_0, %c0_i32_1 : i32, i32, i32
  }
  func.func @transform_4(%arg0: i32) -> (i32, i32) {
    %c0_i32 = arith.constant 0 : i32
    %c0_i32_0 = arith.constant 0 : i32
    %c0_i32_1 = arith.constant 0 : i32
    return %c0_i32, %c0_i32_0 : i32, i32
  }
  func.func @transform_5(%arg0: i32) -> (i32, i32) {
    %c0_i32 = arith.constant 0 : i32
    %c0_i32_0 = arith.constant 0 : i32
    return %arg0, %c0_i32 : i32, i32
  }
}

module attributes {stable_mosaic.version = 11 : i64} {
  func.func @mhsa_kernel(%arg0: i32, %arg1: memref<8x32xbf16, #tpu.memory_space<vmem>>, %arg2: memref<32x96xbf16, #tpu.memory_space<vmem>>, %arg3: memref<1x96xf32, #tpu.memory_space<vmem>>, %arg4: memref<4x8x32xbf16, #tpu.memory_space<vmem>>, %arg5: memref<1x32xf32, #tpu.memory_space<vmem>>, %arg6: memref<8x32xf32, #tpu.memory_space<vmem>>) attributes {dimension_semantics = [#tpu.dimension_semantics<parallel>], iteration_bounds = array<i64: 2>, scalar_prefetch = 0 : i64, scratch_operands = 0 : i64, tpu.core_type = #tpu.core_type<tc>, window_params = [{transform_indices = @transform_0, window_bounds = array<i64: 8, 32>}, {pipeline_mode = #tpu.pipeline_mode<synchronous>, transform_indices = @transform_1, window_bounds = array<i64: 32, 96>}, {pipeline_mode = #tpu.pipeline_mode<synchronous>, transform_indices = @transform_2, window_bounds = array<i64: 1, 96>}, {pipeline_mode = #tpu.pipeline_mode<synchronous>, transform_indices = @transform_3, window_bounds = array<i64: 4, 8, 32>}, {pipeline_mode = #tpu.pipeline_mode<synchronous>, transform_indices = @transform_4, window_bounds = array<i64: 1, 32>}, {transform_indices = @transform_5, window_bounds = array<i64: 8, 32>}]} {
    %c0 = arith.constant 0 : index
    %c0_0 = arith.constant 0 : index
    %0 = vector.load %arg1[%c0, %c0_0] : memref<8x32xbf16, #tpu.memory_space<vmem>>, vector<8x32xbf16>
    %c0_1 = arith.constant 0 : index
    %c0_2 = arith.constant 0 : index
    %1 = vector.load %arg2[%c0_1, %c0_2] : memref<32x96xbf16, #tpu.memory_space<vmem>>, vector<32x96xbf16>
    %cst = arith.constant dense<0.000000e+00> : vector<8x96xf32>
    %2 = tpu.matmul %0, %1, %cst {dimension_numbers = #tpu.dot_dimension_numbers<[1], [0], [0], [1], [0, 0, 1, 1], [], []>} : vector<8x32xbf16>, vector<32x96xbf16>, vector<8x96xf32> -> vector<8x96xf32>
    %c0_3 = arith.constant 0 : index
    %c0_4 = arith.constant 0 : index
    %3 = vector.load %arg3[%c0_3, %c0_4] : memref<1x96xf32, #tpu.memory_space<vmem>>, vector<1x96xf32>
    %4 = vector.broadcast %3 : vector<1x96xf32> to vector<8x96xf32>
    %5 = arith.addf %2, %4 : vector<8x96xf32>
    %cst_5 = arith.constant 0.000000e+00 : f32
    %6 = vector.broadcast %cst_5 : f32 to vector<8x32xf32>
    %7 = vector.extract_strided_slice %5 {offsets = [0, 0], sizes = [8, 8], strides = [1, 1]} : vector<8x96xf32> to vector<8x8xf32>
    %8 = vector.shape_cast %7 : vector<8x8xf32> to vector<1x8x8xf32>
    %9 = arith.truncf %8 : vector<1x8x8xf32> to vector<1x8x8xbf16>
    %10 = vector.extract_strided_slice %5 {offsets = [0, 32], sizes = [8, 8], strides = [1, 1]} : vector<8x96xf32> to vector<8x8xf32>
    %11 = vector.shape_cast %10 : vector<8x8xf32> to vector<1x8x8xf32>
    %12 = arith.truncf %11 : vector<1x8x8xf32> to vector<1x8x8xbf16>
    %13 = vector.extract_strided_slice %5 {offsets = [0, 64], sizes = [8, 8], strides = [1, 1]} : vector<8x96xf32> to vector<8x8xf32>
    %14 = vector.shape_cast %13 : vector<8x8xf32> to vector<1x8x8xf32>
    %15 = arith.truncf %14 : vector<1x8x8xf32> to vector<1x8x8xbf16>
    %cst_6 = arith.constant dense<0.000000e+00> : vector<1x8x8xf32>
    %16 = tpu.matmul %9, %12, %cst_6 {dimension_numbers = #tpu.dot_dimension_numbers<[2], [2], [1], [1], [0, 0, 0, 1, 1, 1], [0], [0]>} : vector<1x8x8xbf16>, vector<1x8x8xbf16>, vector<1x8x8xf32> -> vector<1x8x8xf32>
    %cst_7 = arith.constant dense<0xFF800000> : vector<1x8xf32>
    %17 = vector.multi_reduction <maximumf>, %16, %cst_7 [2] : vector<1x8x8xf32> to vector<1x8xf32>
    %18 = vector.shape_cast %17 : vector<1x8xf32> to vector<1x8x1xf32>
    %19 = vector.broadcast %18 : vector<1x8x1xf32> to vector<1x8x8xf32>
    %20 = arith.subf %16, %19 : vector<1x8x8xf32>
    %21 = math.exp %20 : vector<1x8x8xf32>
    %cst_8 = arith.constant dense<0.000000e+00> : vector<1x8xf32>
    %22 = vector.multi_reduction <add>, %21, %cst_8 [2] : vector<1x8x8xf32> to vector<1x8xf32>
    %23 = vector.shape_cast %22 : vector<1x8xf32> to vector<1x8x1xf32>
    %24 = tpu.reciprocal %23 {approx = true} : vector<1x8x1xf32> -> vector<1x8x1xf32>
    %25 = vector.broadcast %24 : vector<1x8x1xf32> to vector<1x8x8xf32>
    %26 = arith.mulf %21, %25 : vector<1x8x8xf32>
    %27 = arith.truncf %26 : vector<1x8x8xf32> to vector<1x8x8xbf16>
    %cst_9 = arith.constant dense<0.000000e+00> : vector<1x8x8xf32>
    %28 = tpu.matmul %27, %15, %cst_9 {dimension_numbers = #tpu.dot_dimension_numbers<[2], [1], [1], [2], [0, 0, 0, 1, 1, 2], [0], [0]>} : vector<1x8x8xbf16>, vector<1x8x8xbf16>, vector<1x8x8xf32> -> vector<1x8x8xf32>
    %29 = vector.shape_cast %28 : vector<1x8x8xf32> to vector<8x8xf32>
    %30 = arith.truncf %29 : vector<8x8xf32> to vector<8x8xbf16>
    %c0_10 = arith.constant 0 : index
    %c0_11 = arith.constant 0 : index
    %c0_12 = arith.constant 0 : index
    %31 = vector.load %arg4[%c0_10, %c0_11, %c0_12] : memref<4x8x32xbf16, #tpu.memory_space<vmem>>, vector<1x8x32xbf16>
    %32 = vector.shape_cast %31 : vector<1x8x32xbf16> to vector<8x32xbf16>
    %cst_13 = arith.constant dense<0.000000e+00> : vector<8x32xf32>
    %33 = tpu.matmul %30, %32, %cst_13 {dimension_numbers = #tpu.dot_dimension_numbers<[1], [0], [0], [1], [0, 0, 1, 1], [], []>} : vector<8x8xbf16>, vector<8x32xbf16>, vector<8x32xf32> -> vector<8x32xf32>
    %34 = arith.addf %6, %33 : vector<8x32xf32>
    %35 = vector.extract_strided_slice %5 {offsets = [0, 8], sizes = [8, 8], strides = [1, 1]} : vector<8x96xf32> to vector<8x8xf32>
    %36 = vector.shape_cast %35 : vector<8x8xf32> to vector<1x8x8xf32>
    %37 = arith.truncf %36 : vector<1x8x8xf32> to vector<1x8x8xbf16>
    %38 = vector.extract_strided_slice %5 {offsets = [0, 40], sizes = [8, 8], strides = [1, 1]} : vector<8x96xf32> to vector<8x8xf32>
    %39 = vector.shape_cast %38 : vector<8x8xf32> to vector<1x8x8xf32>
    %40 = arith.truncf %39 : vector<1x8x8xf32> to vector<1x8x8xbf16>
    %41 = vector.extract_strided_slice %5 {offsets = [0, 72], sizes = [8, 8], strides = [1, 1]} : vector<8x96xf32> to vector<8x8xf32>
    %42 = vector.shape_cast %41 : vector<8x8xf32> to vector<1x8x8xf32>
    %43 = arith.truncf %42 : vector<1x8x8xf32> to vector<1x8x8xbf16>
    %cst_14 = arith.constant dense<0.000000e+00> : vector<1x8x8xf32>
    %44 = tpu.matmul %37, %40, %cst_14 {dimension_numbers = #tpu.dot_dimension_numbers<[2], [2], [1], [1], [0, 0, 0, 1, 1, 1], [0], [0]>} : vector<1x8x8xbf16>, vector<1x8x8xbf16>, vector<1x8x8xf32> -> vector<1x8x8xf32>
    %cst_15 = arith.constant dense<0xFF800000> : vector<1x8xf32>
    %45 = vector.multi_reduction <maximumf>, %44, %cst_15 [2] : vector<1x8x8xf32> to vector<1x8xf32>
    %46 = vector.shape_cast %45 : vector<1x8xf32> to vector<1x8x1xf32>
    %47 = vector.broadcast %46 : vector<1x8x1xf32> to vector<1x8x8xf32>
    %48 = arith.subf %44, %47 : vector<1x8x8xf32>
    %49 = math.exp %48 : vector<1x8x8xf32>
    %cst_16 = arith.constant dense<0.000000e+00> : vector<1x8xf32>
    %50 = vector.multi_reduction <add>, %49, %cst_16 [2] : vector<1x8x8xf32> to vector<1x8xf32>
    %51 = vector.shape_cast %50 : vector<1x8xf32> to vector<1x8x1xf32>
    %52 = tpu.reciprocal %51 {approx = true} : vector<1x8x1xf32> -> vector<1x8x1xf32>
    %53 = vector.broadcast %52 : vector<1x8x1xf32> to vector<1x8x8xf32>
    %54 = arith.mulf %49, %53 : vector<1x8x8xf32>
    %55 = arith.truncf %54 : vector<1x8x8xf32> to vector<1x8x8xbf16>
    %cst_17 = arith.constant dense<0.000000e+00> : vector<1x8x8xf32>
    %56 = tpu.matmul %55, %43, %cst_17 {dimension_numbers = #tpu.dot_dimension_numbers<[2], [1], [1], [2], [0, 0, 0, 1, 1, 2], [0], [0]>} : vector<1x8x8xbf16>, vector<1x8x8xbf16>, vector<1x8x8xf32> -> vector<1x8x8xf32>
    %57 = vector.shape_cast %56 : vector<1x8x8xf32> to vector<8x8xf32>
    %58 = arith.truncf %57 : vector<8x8xf32> to vector<8x8xbf16>
    %c1 = arith.constant 1 : index
    %c0_18 = arith.constant 0 : index
    %c0_19 = arith.constant 0 : index
    %59 = vector.load %arg4[%c1, %c0_18, %c0_19] : memref<4x8x32xbf16, #tpu.memory_space<vmem>>, vector<1x8x32xbf16>
    %60 = vector.shape_cast %59 : vector<1x8x32xbf16> to vector<8x32xbf16>
    %cst_20 = arith.constant dense<0.000000e+00> : vector<8x32xf32>
    %61 = tpu.matmul %58, %60, %cst_20 {dimension_numbers = #tpu.dot_dimension_numbers<[1], [0], [0], [1], [0, 0, 1, 1], [], []>} : vector<8x8xbf16>, vector<8x32xbf16>, vector<8x32xf32> -> vector<8x32xf32>
    %62 = arith.addf %34, %61 : vector<8x32xf32>
    %63 = vector.extract_strided_slice %5 {offsets = [0, 16], sizes = [8, 8], strides = [1, 1]} : vector<8x96xf32> to vector<8x8xf32>
    %64 = vector.shape_cast %63 : vector<8x8xf32> to vector<1x8x8xf32>
    %65 = arith.truncf %64 : vector<1x8x8xf32> to vector<1x8x8xbf16>
    %66 = vector.extract_strided_slice %5 {offsets = [0, 48], sizes = [8, 8], strides = [1, 1]} : vector<8x96xf32> to vector<8x8xf32>
    %67 = vector.shape_cast %66 : vector<8x8xf32> to vector<1x8x8xf32>
    %68 = arith.truncf %67 : vector<1x8x8xf32> to vector<1x8x8xbf16>
    %69 = vector.extract_strided_slice %5 {offsets = [0, 80], sizes = [8, 8], strides = [1, 1]} : vector<8x96xf32> to vector<8x8xf32>
    %70 = vector.shape_cast %69 : vector<8x8xf32> to vector<1x8x8xf32>
    %71 = arith.truncf %70 : vector<1x8x8xf32> to vector<1x8x8xbf16>
    %cst_21 = arith.constant dense<0.000000e+00> : vector<1x8x8xf32>
    %72 = tpu.matmul %65, %68, %cst_21 {dimension_numbers = #tpu.dot_dimension_numbers<[2], [2], [1], [1], [0, 0, 0, 1, 1, 1], [0], [0]>} : vector<1x8x8xbf16>, vector<1x8x8xbf16>, vector<1x8x8xf32> -> vector<1x8x8xf32>
    %cst_22 = arith.constant dense<0xFF800000> : vector<1x8xf32>
    %73 = vector.multi_reduction <maximumf>, %72, %cst_22 [2] : vector<1x8x8xf32> to vector<1x8xf32>
    %74 = vector.shape_cast %73 : vector<1x8xf32> to vector<1x8x1xf32>
    %75 = vector.broadcast %74 : vector<1x8x1xf32> to vector<1x8x8xf32>
    %76 = arith.subf %72, %75 : vector<1x8x8xf32>
    %77 = math.exp %76 : vector<1x8x8xf32>
    %cst_23 = arith.constant dense<0.000000e+00> : vector<1x8xf32>
    %78 = vector.multi_reduction <add>, %77, %cst_23 [2] : vector<1x8x8xf32> to vector<1x8xf32>
    %79 = vector.shape_cast %78 : vector<1x8xf32> to vector<1x8x1xf32>
    %80 = tpu.reciprocal %79 {approx = true} : vector<1x8x1xf32> -> vector<1x8x1xf32>
    %81 = vector.broadcast %80 : vector<1x8x1xf32> to vector<1x8x8xf32>
    %82 = arith.mulf %77, %81 : vector<1x8x8xf32>
    %83 = arith.truncf %82 : vector<1x8x8xf32> to vector<1x8x8xbf16>
    %cst_24 = arith.constant dense<0.000000e+00> : vector<1x8x8xf32>
    %84 = tpu.matmul %83, %71, %cst_24 {dimension_numbers = #tpu.dot_dimension_numbers<[2], [1], [1], [2], [0, 0, 0, 1, 1, 2], [0], [0]>} : vector<1x8x8xbf16>, vector<1x8x8xbf16>, vector<1x8x8xf32> -> vector<1x8x8xf32>
    %85 = vector.shape_cast %84 : vector<1x8x8xf32> to vector<8x8xf32>
    %86 = arith.truncf %85 : vector<8x8xf32> to vector<8x8xbf16>
    %c2 = arith.constant 2 : index
    %c0_25 = arith.constant 0 : index
    %c0_26 = arith.constant 0 : index
    %87 = vector.load %arg4[%c2, %c0_25, %c0_26] : memref<4x8x32xbf16, #tpu.memory_space<vmem>>, vector<1x8x32xbf16>
    %88 = vector.shape_cast %87 : vector<1x8x32xbf16> to vector<8x32xbf16>
    %cst_27 = arith.constant dense<0.000000e+00> : vector<8x32xf32>
    %89 = tpu.matmul %86, %88, %cst_27 {dimension_numbers = #tpu.dot_dimension_numbers<[1], [0], [0], [1], [0, 0, 1, 1], [], []>} : vector<8x8xbf16>, vector<8x32xbf16>, vector<8x32xf32> -> vector<8x32xf32>
    %90 = arith.addf %62, %89 : vector<8x32xf32>
    %91 = vector.extract_strided_slice %5 {offsets = [0, 24], sizes = [8, 8], strides = [1, 1]} : vector<8x96xf32> to vector<8x8xf32>
    %92 = vector.shape_cast %91 : vector<8x8xf32> to vector<1x8x8xf32>
    %93 = arith.truncf %92 : vector<1x8x8xf32> to vector<1x8x8xbf16>
    %94 = vector.extract_strided_slice %5 {offsets = [0, 56], sizes = [8, 8], strides = [1, 1]} : vector<8x96xf32> to vector<8x8xf32>
    %95 = vector.shape_cast %94 : vector<8x8xf32> to vector<1x8x8xf32>
    %96 = arith.truncf %95 : vector<1x8x8xf32> to vector<1x8x8xbf16>
    %97 = vector.extract_strided_slice %5 {offsets = [0, 88], sizes = [8, 8], strides = [1, 1]} : vector<8x96xf32> to vector<8x8xf32>
    %98 = vector.shape_cast %97 : vector<8x8xf32> to vector<1x8x8xf32>
    %99 = arith.truncf %98 : vector<1x8x8xf32> to vector<1x8x8xbf16>
    %cst_28 = arith.constant dense<0.000000e+00> : vector<1x8x8xf32>
    %100 = tpu.matmul %93, %96, %cst_28 {dimension_numbers = #tpu.dot_dimension_numbers<[2], [2], [1], [1], [0, 0, 0, 1, 1, 1], [0], [0]>} : vector<1x8x8xbf16>, vector<1x8x8xbf16>, vector<1x8x8xf32> -> vector<1x8x8xf32>
    %cst_29 = arith.constant dense<0xFF800000> : vector<1x8xf32>
    %101 = vector.multi_reduction <maximumf>, %100, %cst_29 [2] : vector<1x8x8xf32> to vector<1x8xf32>
    %102 = vector.shape_cast %101 : vector<1x8xf32> to vector<1x8x1xf32>
    %103 = vector.broadcast %102 : vector<1x8x1xf32> to vector<1x8x8xf32>
    %104 = arith.subf %100, %103 : vector<1x8x8xf32>
    %105 = math.exp %104 : vector<1x8x8xf32>
    %cst_30 = arith.constant dense<0.000000e+00> : vector<1x8xf32>
    %106 = vector.multi_reduction <add>, %105, %cst_30 [2] : vector<1x8x8xf32> to vector<1x8xf32>
    %107 = vector.shape_cast %106 : vector<1x8xf32> to vector<1x8x1xf32>
    %108 = tpu.reciprocal %107 {approx = true} : vector<1x8x1xf32> -> vector<1x8x1xf32>
    %109 = vector.broadcast %108 : vector<1x8x1xf32> to vector<1x8x8xf32>
    %110 = arith.mulf %105, %109 : vector<1x8x8xf32>
    %111 = arith.truncf %110 : vector<1x8x8xf32> to vector<1x8x8xbf16>
    %cst_31 = arith.constant dense<0.000000e+00> : vector<1x8x8xf32>
    %112 = tpu.matmul %111, %99, %cst_31 {dimension_numbers = #tpu.dot_dimension_numbers<[2], [1], [1], [2], [0, 0, 0, 1, 1, 2], [0], [0]>} : vector<1x8x8xbf16>, vector<1x8x8xbf16>, vector<1x8x8xf32> -> vector<1x8x8xf32>
    %113 = vector.shape_cast %112 : vector<1x8x8xf32> to vector<8x8xf32>
    %114 = arith.truncf %113 : vector<8x8xf32> to vector<8x8xbf16>
    %c3 = arith.constant 3 : index
    %c0_32 = arith.constant 0 : index
    %c0_33 = arith.constant 0 : index
    %115 = vector.load %arg4[%c3, %c0_32, %c0_33] : memref<4x8x32xbf16, #tpu.memory_space<vmem>>, vector<1x8x32xbf16>
    %116 = vector.shape_cast %115 : vector<1x8x32xbf16> to vector<8x32xbf16>
    %cst_34 = arith.constant dense<0.000000e+00> : vector<8x32xf32>
    %117 = tpu.matmul %114, %116, %cst_34 {dimension_numbers = #tpu.dot_dimension_numbers<[1], [0], [0], [1], [0, 0, 1, 1], [], []>} : vector<8x8xbf16>, vector<8x32xbf16>, vector<8x32xf32> -> vector<8x32xf32>
    %118 = arith.addf %90, %117 : vector<8x32xf32>
    %c0_35 = arith.constant 0 : index
    %c0_36 = arith.constant 0 : index
    %119 = vector.load %arg5[%c0_35, %c0_36] : memref<1x32xf32, #tpu.memory_space<vmem>>, vector<1x32xf32>
    %120 = vector.broadcast %119 : vector<1x32xf32> to vector<8x32xf32>
    %121 = arith.addf %118, %120 : vector<8x32xf32>
    %c0_37 = arith.constant 0 : index
    %c0_38 = arith.constant 0 : index
    %122 = vector.load %arg6[%c0_37, %c0_38] : memref<8x32xf32, #tpu.memory_space<vmem>>, vector<8x32xf32>
    tpu.vector_store %arg6[%c0_37, %c0_38], %121 {strides = array<i32>} : memref<8x32xf32, #tpu.memory_space<vmem>>, vector<8x32xf32>,
    return
  }
  func.func @transform_0(%arg0: i32) -> (i32, i32) {
    %c0_i32 = arith.constant 0 : i32
    %c0_i32_0 = arith.constant 0 : i32
    return %arg0, %c0_i32 : i32, i32
  }
  func.func @transform_1(%arg0: i32) -> (i32, i32) {
    %c0_i32 = arith.constant 0 : i32
    %c0_i32_0 = arith.constant 0 : i32
    %c0_i32_1 = arith.constant 0 : i32
    return %c0_i32, %c0_i32_0 : i32, i32
  }
  func.func @transform_2(%arg0: i32) -> (i32, i32) {
    %c0_i32 = arith.constant 0 : i32
    %c0_i32_0 = arith.constant 0 : i32
    %c0_i32_1 = arith.constant 0 : i32
    return %c0_i32, %c0_i32_0 : i32, i32
  }
  func.func @transform_3(%arg0: i32) -> (i32, i32, i32) {
    %c0_i32 = arith.constant 0 : i32
    %c0_i32_0 = arith.constant 0 : i32
    %c0_i32_1 = arith.constant 0 : i32
    %c0_i32_2 = arith.constant 0 : i32
    return %c0_i32, %c0_i32_0, %c0_i32_1 : i32, i32, i32
  }
  func.func @transform_4(%arg0: i32) -> (i32, i32) {
    %c0_i32 = arith.constant 0 : i32
    %c0_i32_0 = arith.constant 0 : i32
    %c0_i32_1 = arith.constant 0 : i32
    return %c0_i32, %c0_i32_0 : i32, i32
  }
  func.func @transform_5(%arg0: i32) -> (i32, i32) {
    %c0_i32 = arith.constant 0 : i32
    %c0_i32_0 = arith.constant 0 : i32
    return %arg0, %c0_i32 : i32, i32
  }
}

</mosaic_0001>

<llo_original>
// kernel: tpu_custom_call.1
$region0: #{tpu_custom_call.1}
  #allocation0 [shape = 'u32[]', space=smem, size = 0x4, offset = 0x4, fixed_abs, tag = 'smem constant byte address 0x4 - core index']
  #allocation1 [shape = 'u32[72,128]{1,0:T(1,128)}', space=vmem, size = 0x9000, scoped, tag = 'internal scratch']
  %s0 = inlined_call_operand.hbm [shape: bf16[16,32], index: 0, kind: input, shape index: {}]
  %s1 = inlined_call_operand.hbm [shape: bf16[32,96], index: 1, kind: input, shape index: {}]
  %s2 = inlined_call_operand.vmem [shape: f32[1,96], index: 2, kind: input, shape index: {}]
  %s3 = inlined_call_operand.hbm [shape: bf16[4,8,32], index: 3, kind: input, shape index: {}]
  %s4 = inlined_call_operand.vmem [shape: f32[1,32], index: 4, kind: input, shape index: {}]
  %s5 = inlined_call_operand.hbm [shape: f32[16,32], index: 5, kind: output, shape index: {}]
  %s6 = sld [smem:[#allocation0]]
  $region65: #{tpu_custom_call.1} parent=0
    _
  %s8 = ssub.s32 1, %s6
  %s9 = scalar_select 0, %s8, %s6
  $region1: #{tpu_custom_call.1} parent=0
    #allocation2 [shape = 'u8[4096]{0}', space=vmem, size = 0x1000, scoped, tag = 'input window, operand 0']
    #allocation3 [shape = 's32[2]{0}', space=sflag, size = 0x8, scoped, tag = 'scoped memory for tpu_custom_call.1']
    #allocation4 [shape = 's32[2]{0}', space=sflag, size = 0x8, scoped, tag = 'scoped memory for tpu_custom_call.1']
    #allocation5 [shape = 'u8[8192]{0}', space=vmem, size = 0x2000, scoped, tag = 'input window, operand 1, single buffered']
    #allocation6 [shape = 's32[1]{0}', space=sflag, size = 0x4, scoped, tag = 'scoped memory for tpu_custom_call.1']
    #allocation7 [shape = 'u8[8192]{0}', space=vmem, size = 0x2000, scoped, tag = 'input window, operand 3, single buffered']
    #allocation8 [shape = 'u8[8192]{0}', space=vmem, size = 0x2000, scoped, tag = 'output window, operand 0']
    %10 = vsyncpa [#allocation3], 0
    %s11 = scalar_lea.sflag [#allocation3], 1
    %12 = vsyncpa %s11, 0
    %13 = vsyncpa [#allocation6], 0
    %14 = vsyncpa [#allocation4], 0
    %s15 = scalar_lea.sflag [#allocation4], 1
    %16 = vsyncpa %s15, 0
    loop: start=0, step=1, limit=4
    $region2: #{tpu_custom_call.1} parent=1 // loop_pre_header
      _
    $region3: #{tpu_custom_call.1} parent=1 // loop_header
      %s18 = sphi 0, %s22
      %p19 = scmp.ge.s32.totalorder %s18, 4
      %s28 = sphi 0, %s30
      %s31 = sphi 0, %s28
      %s32 = sphi 0, %s31
      %s48 = sphi 0, %s32
      %s52 = sphi 0, %s52
      %s54 = sphi 0, %s52
      %s55 = sphi 0, %s54
      %s69 = sphi 0, %s55
      %s73 = sphi 0, %s73
      %s75 = sphi 0, %s73
      %s76 = sphi 0, %s75
      %s90 = sphi 0, %s76
      %s94 = sphi 0, %s94
      %s96 = sphi 0, %s94
      %s97 = sphi 0, %s96
      %s111 = sphi 0, %s97
      %s115 = sphi 0, %s115
      %s117 = sphi 0, %s115
      %s118 = sphi 0, %s117
      %s132 = sphi 0, %s118
      %s138 = sphi 0, %s140
      %s141 = sphi 0, %s138
      %s142 = sphi 0, %s141
      %s158 = sphi 0, %s142
    $region4: #{tpu_custom_call.1} parent=1 // loop_header_branch
      %21 = sbr.rel (%p19) target = $region8
    $region5: #{tpu_custom_call.1} parent=1 // loop_body
      %s23 = ssub.s32 %s18, 1
      %s24 = ssub.s32 %s18, 2
      %s25 = sadd.s32 %s18, 1
      %s26 = ssub.s32 %s18, %s25
      %p27 = scmp.eq.s32.totalorder %s26, 0
      %s29 = sadd.s32 %s28, 1
      %s30 = scalar_select %p27, %s28, %s29
      %p33 = pneg %p27
      %p34 = scmp.eq.s32.totalorder %s18, 1
      %p35 = por %p33, %p34
      %p36 = scmp.ne.s32.totalorder %s28, %s31
      %p37 = scmp.eq.s32.totalorder %s18, 0
      %p38 = por %p36, %p37
      %p39 = scmp.ne.s32.totalorder %s28, %s31
      %p40 = scmp.eq.s32.totalorder %s23, 1
      %p41 = por %p39, %p40
      %p42 = scmp.ne.s32.totalorder %s31, %s32
      %p43 = scmp.eq.s32.totalorder %s23, 0
      %p44 = por %p42, %p43
      %p45 = scmp.ne.s32.totalorder %s31, %s32
      %p46 = scmp.eq.s32.totalorder %s24, 1
      %p47 = por %p45, %p46
      %p49 = scmp.ne.s32.totalorder %s32, %s48
      %p50 = scmp.eq.s32.totalorder %s24, 0
      %p51 = por %p49, %p50
      %s53 = sadd.s32 %s52, 1
      %p56 = scmp.eq.s32.totalorder %s18, 1
      %p57 = scmp.ne.s32.totalorder %s52, %s54
      %p58 = scmp.eq.s32.totalorder %s18, 0
      %p59 = por %p57, %p58
      %p60 = scmp.ne.s32.totalorder %s52, %s54
      %p61 = scmp.eq.s32.totalorder %s23, 1
      %p62 = por %p60, %p61
      %p63 = scmp.ne.s32.totalorder %s54, %s55
      %p64 = scmp.eq.s32.totalorder %s23, 0
      %p65 = por %p63, %p64
      %p66 = scmp.ne.s32.totalorder %s54, %s55
      %p67 = scmp.eq.s32.totalorder %s24, 1
      %p68 = por %p66, %p67
      %p70 = scmp.ne.s32.totalorder %s55, %s69
      %p71 = scmp.eq.s32.totalorder %s24, 0
      %p72 = por %p70, %p71
      %s74 = sadd.s32 %s73, 1
      %p77 = scmp.eq.s32.totalorder %s18, 1
      %p78 = scmp.ne.s32.totalorder %s73, %s75
      %p79 = scmp.eq.s32.totalorder %s18, 0
      %p80 = por %p78, %p79
      %p81 = scmp.ne.s32.totalorder %s73, %s75
      %p82 = scmp.eq.s32.totalorder %s23, 1
      %p83 = por %p81, %p82
      %p84 = scmp.ne.s32.totalorder %s75, %s76
      %p85 = scmp.eq.s32.totalorder %s23, 0
      %p86 = por %p84, %p85
      %p87 = scmp.ne.s32.totalorder %s75, %s76
      %p88 = scmp.eq.s32.totalorder %s24, 1
      %p89 = por %p87, %p88
      %p91 = scmp.ne.s32.totalorder %s76, %s90
      %p92 = scmp.eq.s32.totalorder %s24, 0
      %p93 = por %p91, %p92
      %s95 = sadd.s32 %s94, 1
      %p98 = scmp.eq.s32.totalorder %s18, 1
      %p99 = scmp.ne.s32.totalorder %s94, %s96
      %p100 = scmp.eq.s32.totalorder %s18, 0
      %p101 = por %p99, %p100
      %p102 = scmp.ne.s32.totalorder %s94, %s96
      %p103 = scmp.eq.s32.totalorder %s23, 1
      %p104 = por %p102, %p103
      %p105 = scmp.ne.s32.totalorder %s96, %s97
      %p106 = scmp.eq.s32.totalorder %s23, 0
      %p107 = por %p105, %p106
      %p108 = scmp.ne.s32.totalorder %s96, %s97
      %p109 = scmp.eq.s32.totalorder %s24, 1
      %p110 = por %p108, %p109
      %p112 = scmp.ne.s32.totalorder %s97, %s111
      %p113 = scmp.eq.s32.totalorder %s24, 0
      %p114 = por %p112, %p113
      %s116 = sadd.s32 %s115, 1
      %p119 = scmp.eq.s32.totalorder %s18, 1
      %p120 = scmp.ne.s32.totalorder %s115, %s117
      %p121 = scmp.eq.s32.totalorder %s18, 0
      %p122 = por %p120, %p121
      %p123 = scmp.ne.s32.totalorder %s115, %s117
      %p124 = scmp.eq.s32.totalorder %s23, 1
      %p125 = por %p123, %p124
      %p126 = scmp.ne.s32.totalorder %s117, %s118
      %p127 = scmp.eq.s32.totalorder %s23, 0
      %p128 = por %p126, %p127
      %p129 = scmp.ne.s32.totalorder %s117, %s118
      %p130 = scmp.eq.s32.totalorder %s24, 1
      %p131 = por %p129, %p130
      %p133 = scmp.ne.s32.totalorder %s118, %s132
      %p134 = scmp.eq.s32.totalorder %s24, 0
      %p135 = por %p133, %p134
      %s136 = ssub.s32 %s18, %s25
      %p137 = scmp.eq.s32.totalorder %s136, 0
      %s139 = sadd.s32 %s138, 1
      %s140 = scalar_select %p137, %s138, %s139
      %p143 = pneg %p137
      %p144 = scmp.eq.s32.totalorder %s18, 1
      %p145 = por %p143, %p144
      %p146 = scmp.ne.s32.totalorder %s138, %s141
      %p147 = scmp.eq.s32.totalorder %s18, 0
      %p148 = por %p146, %p147
      %p149 = scmp.ne.s32.totalorder %s138, %s141
      %p150 = scmp.eq.s32.totalorder %s23, 1
      %p151 = por %p149, %p150
      %p152 = scmp.ne.s32.totalorder %s141, %s142
      %p153 = scmp.eq.s32.totalorder %s23, 0
      %p154 = por %p152, %p153
      %p155 = scmp.ne.s32.totalorder %s141, %s142
      %p156 = scmp.eq.s32.totalorder %s24, 1
      %p157 = por %p155, %p156
      %p159 = scmp.ne.s32.totalorder %s142, %s158
      %p160 = scmp.eq.s32.totalorder %s24, 0
      %p161 = por %p159, %p160
      %p162 = scmp.le.s32.totalorder 1, %s18
      %p163 = scmp.lt.s32.totalorder %s18, 3
      %p164 = pnand %p162, %p163
      %p165 = pneg %p164
      // Predicated region
      $region9: #{tpu_custom_call.1} parent=5 // pred_check
        _
      $region10: #{tpu_custom_call.1} parent=5 // pred_check_branch
        %167 = sbr.rel (%p164) target = $region12
      $region11: #{tpu_custom_call.1} parent=5 // pred_region
        %s168 = ssub.s32 %s18, 1
        // Predicated region
        $region13: #{tpu_custom_call.1} parent=11 // pred_check
          %p169 = pneg %p65
        $region14: #{tpu_custom_call.1} parent=11 // pred_check_branch
          %171 = sbr.rel (%p169) target = $region16
        $region15: #{tpu_custom_call.1} parent=11 // pred_region
          %173 = vsyncadd [#allocation6], 0
          %s174 = sshll.u32 %s1, 4
          %s175 = int_to_ptr.hbm [resolvable:$true] %s174
          %s176 = sshll.u32 [#allocation5], 4
          %s177 = int_to_ptr.vmem [resolvable:$true] %s176
          %182 = dma.hbm_to_vmem [thread:$0]  %s175, 256, %s177, [#allocation6], 64, 64, 4
        $region16: #{tpu_custom_call.1} parent=11 // pred_fallthru
          _
        // Predicated region
        $region17: #{tpu_custom_call.1} parent=11 // pred_check
          %p183 = pneg %p86
        $region18: #{tpu_custom_call.1} parent=11 // pred_check_branch
          %185 = sbr.rel (%p183) target = $region20
        $region19: #{tpu_custom_call.1} parent=11 // pred_region
          _
        $region20: #{tpu_custom_call.1} parent=11 // pred_fallthru
          _
        // Predicated region
        $region21: #{tpu_custom_call.1} parent=11 // pred_check
          %p186 = pneg %p107
        $region22: #{tpu_custom_call.1} parent=11 // pred_check_branch
          %188 = sbr.rel (%p186) target = $region24
        $region23: #{tpu_custom_call.1} parent=11 // pred_region
          %190 = vsyncadd [#allocation6], 0
          %s191 = sshll.u32 %s3, 4
          %s192 = int_to_ptr.hbm [resolvable:$true] %s191
          %s193 = sshll.u32 [#allocation7], 4
          %s194 = int_to_ptr.vmem [resolvable:$true] %s193
          %199 = dma.hbm_to_vmem [thread:$0]  %s192, 256, %s194, [#allocation6], 64, 64, 4
        $region24: #{tpu_custom_call.1} parent=11 // pred_fallthru
          _
        // Predicated region
        $region25: #{tpu_custom_call.1} parent=11 // pred_check
          %p200 = pneg %p128
        $region26: #{tpu_custom_call.1} parent=11 // pred_check_branch
          %202 = sbr.rel (%p200) target = $region28
        $region27: #{tpu_custom_call.1} parent=11 // pred_region
          _
        $region28: #{tpu_custom_call.1} parent=11 // pred_fallthru
          _
      $region12: #{tpu_custom_call.1} parent=5 // pred_fallthru
        _
      %p203 = scmp.lt.s32.totalorder %s18, 2
      // Predicated region
      $region29: #{tpu_custom_call.1} parent=5 // pred_check
        %p204 = pneg %p203
      $region30: #{tpu_custom_call.1} parent=5 // pred_check_branch
        %206 = sbr.rel (%p204) target = $region32
      $region31: #{tpu_custom_call.1} parent=5 // pred_region
        // Predicated region
        $region33: #{tpu_custom_call.1} parent=31 // pred_check
          %p207 = pneg %p38
        $region34: #{tpu_custom_call.1} parent=31 // pred_check_branch
          %209 = sbr.rel (%p207) target = $region36
        $region35: #{tpu_custom_call.1} parent=31 // pred_region
          %s210 = sand.u32 %s28, 1
          %s211 = scalar_lea.sflag [#allocation3], %s210
          %s212 = sand.u32 %s28, 1
          %s213 = smul.addr %s212, 4
          %s214 = scalar_lea.vmem [#allocation2], %s213
          %216 = vsyncadd %s211, 0
          %s217 = smul.addr %s18, 4
          %s218 = scalar_lea.hbm %s0, %s217
          %s220 = sshll.u32 %s218, 4
          %s221 = int_to_ptr.hbm [resolvable:$true] %s220
          %s222 = sshll.u32 %s214, 4
          %s223 = int_to_ptr.vmem [resolvable:$true] %s222
          %225 = dma.hbm_to_vmem [thread:$0]  %s221, 64, %s223, %s211
        $region36: #{tpu_custom_call.1} parent=31 // pred_fallthru
          _
      $region32: #{tpu_custom_call.1} parent=5 // pred_fallthru
        _
      %p226 = scmp.le.s32.totalorder 1, %s18
      %p227 = scmp.lt.s32.totalorder %s18, 3
      %p228 = pnand %p226, %p227
      %p229 = pneg %p228
      // Predicated region
      $region37: #{tpu_custom_call.1} parent=5 // pred_check
        _
      $region38: #{tpu_custom_call.1} parent=5 // pred_check_branch
        %231 = sbr.rel (%p228) target = $region40
      $region39: #{tpu_custom_call.1} parent=5 // pred_region
        %s232 = ssub.s32 %s18, 1
        %s233 = sand.u32 %s31, 1
        %s234 = scalar_lea.sflag [#allocation3], %s233
        %s235 = sand.u32 %s31, 1
        %s236 = smul.addr %s235, 4
        %s237 = scalar_lea.vmem [#allocation2], %s236
        // Predicated region
        $region41: #{tpu_custom_call.1} parent=39 // pred_check
          %p238 = pneg %p44
        $region42: #{tpu_custom_call.1} parent=39 // pred_check_branch
          %240 = sbr.rel (%p238) target = $region44
        $region43: #{tpu_custom_call.1} parent=39 // pred_region
          %242 = dma.done %s234, 64
        $region44: #{tpu_custom_call.1} parent=39 // pred_fallthru
          _
        // Predicated region
        $region45: #{tpu_custom_call.1} parent=39 // pred_check
          %p243 = pneg %p65
        $region46: #{tpu_custom_call.1} parent=39 // pred_check_branch
          %245 = sbr.rel (%p243) target = $region48
        $region47: #{tpu_custom_call.1} parent=39 // pred_region
          %247 = dma.done [#allocation6], 256
        $region48: #{tpu_custom_call.1} parent=39 // pred_fallthru
          _
        // Predicated region
        $region49: #{tpu_custom_call.1} parent=39 // pred_check
          %p248 = pneg %p107
        $region50: #{tpu_custom_call.1} parent=39 // pred_check_branch
          %250 = sbr.rel (%p248) target = $region52
        $region51: #{tpu_custom_call.1} parent=39 // pred_region
          %252 = dma.done [#allocation6], 256
        $region52: #{tpu_custom_call.1} parent=39 // pred_fallthru
          _
        %s253 = sand.u32 %s31, 1
        %s254 = scalar_lea.sflag [#allocation3], %s253
        %s255 = sand.u32 %s31, 1
        %s256 = smul.addr %s255, 4
        %s257 = scalar_lea.vmem [#allocation2], %s256
        %p258 = pneg %p44
        %p259 = pneg %p41
        %p260 = pneg %p65
        %p261 = pneg %p62
        %p262 = pneg %p86
        %p263 = pneg %p83
        %p264 = pneg %p107
        %p265 = pneg %p104
        %p266 = pneg %p128
        %p267 = pneg %p125
        %p268 = pneg %p154
        %p269 = pneg %p151
        %s270 = sand.u32 %s141, 1
        %s271 = scalar_lea.sflag [#allocation4], %s270
        %s272 = sand.u32 %s141, 1
        %s273 = smul.addr %s272, 8
        %s274 = scalar_lea.vmem [#allocation8], %s273
        %v276 = vld [vmem:[%s237] sm:$0xf]
        %v277 = vld [vmem:[#allocation5] sm:$0xf]
        %v278 = vld [vmem:[#allocation5 + $0x4] sm:$0xf]
        %v279 = vld [vmem:[#allocation5 + $0x8] sm:$0xf]
        %v280 = vld [vmem:[#allocation5 + $0xc] sm:$0xf]
        %v281 = vld [vmem:[%s2] sm:$0x1]
        %v283 = vperm.slane %v281, 0
        %v289 = vunpack.c.l.b16 %v277
        %v290 = vunpack.c.l.b16 %v278
        %v291 = vunpack.c.l.b16 %v279
        %v292 = vunpack.c.l.b16 %v280
        %v293 = vpack.c.b16 %v290, %v289
        %v294 = vpack.c.b16 %v292, %v291
        %vm297 = vcmask 261120
        %v299 = vsel %vm297, %v276, 0
        %301 = vmatpush.bf16.msra.mxu0 0
        %302 = vmatpush.bf16.msra.mxu0 0
        %303 = vmatpush.bf16.msra.mxu0 0
        %304 = vmatpush.bf16.msra.mxu0 0
        %305 = vmatpush.bf16.msra.mxu0 0
        %306 = vmatpush.bf16.msra.mxu0 0
        %307 = vmatpush.bf16.msra.mxu0 %v294
        %308 = vmatpush.bf16.msra.mxu0 %v293
        %309 = vmatmul.bf16.gmra.mxu0 %v299
        %v310 = vpop.f32.mrf.mxu0
        %v311 = vadd.f32 %v283, %v310
        %v312 = vpop.f32.mrf.mxu0
        %313 = vdwg.mxu0
        %v314 = vpack.c.bf16 %v311, %v311
        %v316 = vunpack.c.l.b16 %v314
        %v317 = vpack.c.b16 %v316, %v316
        %318 = vrot.lane.b32.xlu0 %v317, 96
        %v319 = vpop.permute.xlu0 %318
        %vm320 = vcmask 64512
        %v322 = vsel %vm320, %v314, 0
        %v325 = vsel %vm320, %v319, 0
        %327 = vmatpush.bf16.xpose.msra.mxu0 0
        %328 = vmatpush.bf16.xpose.msra.mxu0 0
        %329 = vmatpush.bf16.xpose.msra.mxu0 0
        %330 = vmatpush.bf16.xpose.msra.mxu0 0
        %331 = vmatpush.bf16.xpose.msra.mxu0 0
        %332 = vmatpush.bf16.xpose.msra.mxu0 0
        %333 = vmatpush.bf16.xpose.msra.mxu0 0
        %334 = vmatpush.bf16.xpose.msra.mxu0 %v325
        %335 = vmatmul.bf16.gmra.mxu0 %v322
        %v336 = vpop.f32.mrf.mxu0
        %v337 = vadd.f32 0.0, %v336
        %v338 = vpop.f32.mrf.mxu0
        %339 = vdwg.mxu0
        %v340 = vsel %vm320, %v337, -inf
        %341 = vmax.xlane.f32.xlu0 %v340
        %v342 = vpop.xlane.xlu0 %341
        %v343 = vsub.f32 %v337, %v342
        %v344 = vmul.f32 %v343, 1.442695
        %v345 = vpow.pop %v344
        %v346 = vsel %vm320, %v345, 0.0
        %347 = vadd.xlane.f32.xlu0 %v346
        %v348 = vpop.xlane.xlu0 %347
        %v349 = vrcp.pop %v348
        %v350 = vmul.f32 %v345, %v349
        %v351 = vpack.c.bf16 %v350, %v350
        %352 = vrot.lane.b32.xlu0 %v317, 64
        %v353 = vpop.permute.xlu0 %352
        %v355 = vsel %vm320, %v351, 0
        %vm357 = vcmask 1043456
        %v359 = vsel %vm357, %v353, 0
        %361 = vmatpush.bf16.msra.mxu0 0
        %362 = vmatpush.bf16.msra.mxu0 0
        %363 = vmatpush.bf16.msra.mxu0 0
        %364 = vmatpush.bf16.msra.mxu0 0
        %365 = vmatpush.bf16.msra.mxu0 0
        %366 = vmatpush.bf16.msra.mxu0 0
        %367 = vmatpush.bf16.msra.mxu0 0
        %368 = vmatpush.bf16.msra.mxu0 %v359
        %369 = vmatmul.bf16.gmra.mxu0 %v355
        %v370 = vpop.f32.mrf.mxu0
        %v371 = vadd.f32 0.0, %v370
        %v372 = vpop.f32.mrf.mxu0
        %373 = vdwg.mxu0
        %v374 = vpack.c.bf16 %v371, %v371
        %v375 = vld [vmem:[#allocation7] sm:$0xf]
        %376 = vrot.lane.b32.xlu0 %v317, 120
        %v377 = vpop.permute.xlu0 %376
        %378 = vrot.lane.b32.xlu0 %v317, 88
        %v379 = vpop.permute.xlu0 %378
        %v381 = vsel %vm320, %v377, 0
        %v384 = vsel %vm320, %v379, 0
        %386 = vmatpush.bf16.xpose.msra.mxu0 0
        %387 = vmatpush.bf16.xpose.msra.mxu0 0
        %388 = vmatpush.bf16.xpose.msra.mxu0 0
        %389 = vmatpush.bf16.xpose.msra.mxu0 0
        %390 = vmatpush.bf16.xpose.msra.mxu0 0
        %391 = vmatpush.bf16.xpose.msra.mxu0 0
        %392 = vmatpush.bf16.xpose.msra.mxu0 0
        %393 = vmatpush.bf16.xpose.msra.mxu0 %v384
        %394 = vmatmul.bf16.gmra.mxu0 %v381
        %v395 = vpop.f32.mrf.mxu0
        %v396 = vadd.f32 0.0, %v395
        %v397 = vpop.f32.mrf.mxu0
        %398 = vdwg.mxu0
        %v399 = vsel %vm320, %v396, -inf
        %400 = vmax.xlane.f32.xlu0 %v399
        %v401 = vpop.xlane.xlu0 %400
        %v402 = vsub.f32 %v396, %v401
        %v403 = vmul.f32 %v402, 1.442695
        %v404 = vpow.pop %v403
        %v405 = vsel %vm320, %v404, 0.0
        %406 = vadd.xlane.f32.xlu0 %v405
        %v407 = vpop.xlane.xlu0 %406
        %v408 = vrcp.pop %v407
        %v409 = vmul.f32 %v404, %v408
        %v410 = vpack.c.bf16 %v409, %v409
        %411 = vrot.lane.b32.xlu0 %v317, 56
        %v412 = vpop.permute.xlu0 %411
        %v414 = vsel %vm320, %v410, 0
        %v417 = vsel %vm357, %v412, 0
        %419 = vmatpush.bf16.msra.mxu0 0
        %420 = vmatpush.bf16.msra.mxu0 0
        %421 = vmatpush.bf16.msra.mxu0 0
        %422 = vmatpush.bf16.msra.mxu0 0
        %423 = vmatpush.bf16.msra.mxu0 0
        %424 = vmatpush.bf16.msra.mxu0 0
        %425 = vmatpush.bf16.msra.mxu0 0
        %426 = vmatpush.bf16.msra.mxu0 %v417
        %427 = vmatmul.bf16.gmra.mxu0 %v414
        %v428 = vpop.f32.mrf.mxu0
        %v429 = vadd.f32 0.0, %v428
        %v430 = vpop.f32.mrf.mxu0
        %431 = vdwg.mxu0
        %v432 = vpack.c.bf16 %v429, %v429
        %s433 = scalar_lea.vmem [#allocation7], 4
        %v434 = vld [vmem:[%s433] sm:$0xf]
        %v436 = vsel %vm320, %v432, 0
        %v439 = vsel %vm357, %v434, 0
        %441 = vmatpush.bf16.msra.mxu0 0
        %442 = vmatpush.bf16.msra.mxu0 0
        %443 = vmatpush.bf16.msra.mxu0 0
        %444 = vmatpush.bf16.msra.mxu0 0
        %445 = vmatpush.bf16.msra.mxu0 0
        %446 = vmatpush.bf16.msra.mxu0 0
        %447 = vmatpush.bf16.msra.mxu0 0
        %448 = vmatpush.bf16.msra.mxu0 %v439
        %449 = vmatmul.bf16.gmra.mxu0 %v436
        %v450 = vpop.f32.mrf.mxu0
        %v451 = vadd.f32 0.0, %v450
        %v452 = vpop.f32.mrf.mxu0
        %453 = vdwg.mxu0
        %v455 = vsel %vm320, %v374, 0
        %v458 = vsel %vm357, %v375, 0
        %460 = vmatpush.bf16.msra.mxu0 0
        %461 = vmatpush.bf16.msra.mxu0 0
        %462 = vmatpush.bf16.msra.mxu0 0
        %463 = vmatpush.bf16.msra.mxu0 0
        %464 = vmatpush.bf16.msra.mxu0 0
        %465 = vmatpush.bf16.msra.mxu0 0
        %466 = vmatpush.bf16.msra.mxu0 0
        %467 = vmatpush.bf16.msra.mxu0 %v458
        %468 = vmatmul.bf16.gmra.mxu0 %v455
        %v469 = vpop.f32.mrf.mxu0
        %v470 = vadd.f32 %v451, %v469
        %v471 = vpop.f32.mrf.mxu0
        %472 = vdwg.mxu0
        %473 = vrot.lane.b32.xlu0 %v317, 112
        %v474 = vpop.permute.xlu0 %473
        %475 = vrot.lane.b32.xlu0 %v317, 80
        %v476 = vpop.permute.xlu0 %475
        %v478 = vsel %vm320, %v474, 0
        %v481 = vsel %vm320, %v476, 0
        %483 = vmatpush.bf16.xpose.msra.mxu0 0
        %484 = vmatpush.bf16.xpose.msra.mxu0 0
        %485 = vmatpush.bf16.xpose.msra.mxu0 0
        %486 = vmatpush.bf16.xpose.msra.mxu0 0
        %487 = vmatpush.bf16.xpose.msra.mxu0 0
        %488 = vmatpush.bf16.xpose.msra.mxu0 0
        %489 = vmatpush.bf16.xpose.msra.mxu0 0
        %490 = vmatpush.bf16.xpose.msra.mxu0 %v481
        %491 = vmatmul.bf16.gmra.mxu0 %v478
        %v492 = vpop.f32.mrf.mxu0
        %v493 = vadd.f32 0.0, %v492
        %v494 = vpop.f32.mrf.mxu0
        %495 = vdwg.mxu0
        %v496 = vsel %vm320, %v493, -inf
        %497 = vmax.xlane.f32.xlu0 %v496
        %v498 = vpop.xlane.xlu0 %497
        %v499 = vsub.f32 %v493, %v498
        %v500 = vmul.f32 %v499, 1.442695
        %v501 = vpow.pop %v500
        %v502 = vsel %vm320, %v501, 0.0
        %503 = vadd.xlane.f32.xlu0 %v502
        %v504 = vpop.xlane.xlu0 %503
        %v505 = vrcp.pop %v504
        %v506 = vmul.f32 %v501, %v505
        %v507 = vpack.c.bf16 %v506, %v506
        %508 = vrot.lane.b32.xlu0 %v317, 48
        %v509 = vpop.permute.xlu0 %508
        %v511 = vsel %vm320, %v507, 0
        %v514 = vsel %vm357, %v509, 0
        %516 = vmatpush.bf16.msra.mxu0 0
        %517 = vmatpush.bf16.msra.mxu0 0
        %518 = vmatpush.bf16.msra.mxu0 0
        %519 = vmatpush.bf16.msra.mxu0 0
        %520 = vmatpush.bf16.msra.mxu0 0
        %521 = vmatpush.bf16.msra.mxu0 0
        %522 = vmatpush.bf16.msra.mxu0 0
        %523 = vmatpush.bf16.msra.mxu0 %v514
        %524 = vmatmul.bf16.gmra.mxu0 %v511
        %v525 = vpop.f32.mrf.mxu0
        %v526 = vadd.f32 0.0, %v525
        %v527 = vpop.f32.mrf.mxu0
        %528 = vdwg.mxu0
        %v529 = vpack.c.bf16 %v526, %v526
        %s530 = scalar_lea.vmem [#allocation7], 8
        %v531 = vld [vmem:[%s530] sm:$0xf]
        %v533 = vsel %vm320, %v529, 0
        %v536 = vsel %vm357, %v531, 0
        %538 = vmatpush.bf16.msra.mxu0 0
        %539 = vmatpush.bf16.msra.mxu0 0
        %540 = vmatpush.bf16.msra.mxu0 0
        %541 = vmatpush.bf16.msra.mxu0 0
        %542 = vmatpush.bf16.msra.mxu0 0
        %543 = vmatpush.bf16.msra.mxu0 0
        %544 = vmatpush.bf16.msra.mxu0 0
        %545 = vmatpush.bf16.msra.mxu0 %v536
        %546 = vmatmul.bf16.gmra.mxu0 %v533
        %v547 = vpop.f32.mrf.mxu0
        %v548 = vadd.f32 0.0, %v547
        %v549 = vpop.f32.mrf.mxu0
        %550 = vdwg.mxu0
        %v551 = vadd.f32 %v470, %v548
        %552 = vrot.lane.b32.xlu0 %v317, 104
        %v553 = vpop.permute.xlu0 %552
        %554 = vrot.lane.b32.xlu0 %v317, 72
        %v555 = vpop.permute.xlu0 %554
        %v557 = vsel %vm320, %v553, 0
        %v560 = vsel %vm320, %v555, 0
        %562 = vmatpush.bf16.xpose.msra.mxu0 0
        %563 = vmatpush.bf16.xpose.msra.mxu0 0
        %564 = vmatpush.bf16.xpose.msra.mxu0 0
        %565 = vmatpush.bf16.xpose.msra.mxu0 0
        %566 = vmatpush.bf16.xpose.msra.mxu0 0
        %567 = vmatpush.bf16.xpose.msra.mxu0 0
        %568 = vmatpush.bf16.xpose.msra.mxu0 0
        %569 = vmatpush.bf16.xpose.msra.mxu0 %v560
        %570 = vmatmul.bf16.gmra.mxu0 %v557
        %v571 = vpop.f32.mrf.mxu0
        %v572 = vadd.f32 0.0, %v571
        %v573 = vpop.f32.mrf.mxu0
        %574 = vdwg.mxu0
        %v575 = vsel %vm320, %v572, -inf
        %576 = vmax.xlane.f32.xlu0 %v575
        %v577 = vpop.xlane.xlu0 %576
        %v578 = vsub.f32 %v572, %v577
        %v579 = vmul.f32 %v578, 1.442695
        %v580 = vpow.pop %v579
        %v581 = vsel %vm320, %v580, 0.0
        %582 = vadd.xlane.f32.xlu0 %v581
        %v583 = vpop.xlane.xlu0 %582
        %v584 = vrcp.pop %v583
        %v585 = vmul.f32 %v580, %v584
        %v586 = vpack.c.bf16 %v585, %v585
        %587 = vrot.lane.b32.xlu0 %v317, 40
        %v588 = vpop.permute.xlu0 %587
        %v590 = vsel %vm320, %v586, 0
        %v593 = vsel %vm357, %v588, 0
        %595 = vmatpush.bf16.msra.mxu0 0
        %596 = vmatpush.bf16.msra.mxu0 0
        %597 = vmatpush.bf16.msra.mxu0 0
        %598 = vmatpush.bf16.msra.mxu0 0
        %599 = vmatpush.bf16.msra.mxu0 0
        %600 = vmatpush.bf16.msra.mxu0 0
        %601 = vmatpush.bf16.msra.mxu0 0
        %602 = vmatpush.bf16.msra.mxu0 %v593
        %603 = vmatmul.bf16.gmra.mxu0 %v590
        %v604 = vpop.f32.mrf.mxu0
        %v605 = vadd.f32 0.0, %v604
        %v606 = vpop.f32.mrf.mxu0
        %607 = vdwg.mxu0
        %v608 = vpack.c.bf16 %v605, %v605
        %s609 = scalar_lea.vmem [#allocation7], 12
        %v610 = vld [vmem:[%s609] sm:$0xf]
        %v612 = vsel %vm320, %v608, 0
        %v615 = vsel %vm357, %v610, 0
        %617 = vmatpush.bf16.msra.mxu0 0
        %618 = vmatpush.bf16.msra.mxu0 0
        %619 = vmatpush.bf16.msra.mxu0 0
        %620 = vmatpush.bf16.msra.mxu0 0
        %621 = vmatpush.bf16.msra.mxu0 0
        %622 = vmatpush.bf16.msra.mxu0 0
        %623 = vmatpush.bf16.msra.mxu0 0
        %624 = vmatpush.bf16.msra.mxu0 %v615
        %625 = vmatmul.bf16.gmra.mxu0 %v612
        %v626 = vpop.f32.mrf.mxu0
        %v627 = vadd.f32 0.0, %v626
        %v628 = vpop.f32.mrf.mxu0
        %629 = vdwg.mxu0
        %v630 = vadd.f32 %v551, %v627
        %v631 = vld [vmem:[%s4] sm:$0x1]
        %v633 = vperm.slane %v631, 0
        %v635 = vadd.f32 %v630, %v633
        %636 = vst.msk [vmem:[%s274] sm:$0xff] %vm297, %v635
        %s637 = sand.u32 %s141, 1
        %s638 = scalar_lea.sflag [#allocation4], %s637
        %s639 = sand.u32 %s141, 1
        %s640 = smul.addr %s639, 8
        %s641 = scalar_lea.vmem [#allocation8], %s640
        // Predicated region
        $region53: #{tpu_custom_call.1} parent=39 // pred_check
          %p642 = pneg %p151
        $region54: #{tpu_custom_call.1} parent=39 // pred_check_branch
          %644 = sbr.rel (%p642) target = $region56
        $region55: #{tpu_custom_call.1} parent=39 // pred_region
          %646 = vsyncadd %s638, 0
          %s647 = smul.addr %s23, 8
          %s648 = scalar_lea.hbm %s5, %s647
          %s650 = sshll.u32 %s641, 4
          %s651 = int_to_ptr.vmem [resolvable:$true] %s650
          %s652 = sshll.u32 %s648, 4
          %s653 = int_to_ptr.hbm [resolvable:$true] %s652
          %655 = dma.vmem_to_hbm [thread:$0]  %s651, 128, %s653, %s638
        $region56: #{tpu_custom_call.1} parent=39 // pred_fallthru
          _
      $region40: #{tpu_custom_call.1} parent=5 // pred_fallthru
        _
      %p656 = scmp.le.s32.totalorder 2, %s18
      // Predicated region
      $region57: #{tpu_custom_call.1} parent=5 // pred_check
        %p657 = pneg %p656
      $region58: #{tpu_custom_call.1} parent=5 // pred_check_branch
        %659 = sbr.rel (%p657) target = $region60
      $region59: #{tpu_custom_call.1} parent=5 // pred_region
        %s660 = ssub.s32 %s18, 2
        // Predicated region
        $region61: #{tpu_custom_call.1} parent=59 // pred_check
          %p661 = pneg %p157
        $region62: #{tpu_custom_call.1} parent=59 // pred_check_branch
          %663 = sbr.rel (%p661) target = $region64
        $region63: #{tpu_custom_call.1} parent=59 // pred_region
          %s664 = sand.u32 %s142, 1
          %s665 = scalar_lea.sflag [#allocation4], %s664
          %s666 = sand.u32 %s142, 1
          %s667 = smul.addr %s666, 8
          %s668 = scalar_lea.vmem [#allocation8], %s667
          %670 = dma.done %s665, 128
        $region64: #{tpu_custom_call.1} parent=59 // pred_fallthru
          _
      $region60: #{tpu_custom_call.1} parent=5 // pred_fallthru
        _
    $region6: #{tpu_custom_call.1} parent=1 // loop_footer
      %s22 = sadd.s32 1, %s18
    $region7: #{tpu_custom_call.1} parent=1 // loop_footer_branch
      %17 = sbr.rel target = $region3
    $region8: #{tpu_custom_call.1} parent=1 // loop_exit
      _
    %671 = vsyncpa [#allocation3], 1
    %s672 = scalar_lea.sflag [#allocation3], 1
    %673 = vsyncpa %s672, 1
    %674 = vsyncpa [#allocation6], 1
    %675 = vsyncpa [#allocation4], 1
    %s676 = scalar_lea.sflag [#allocation4], 1
    %677 = vsyncpa %s676, 1

// kernel: tpu_custom_call.1
$region0: #{tpu_custom_call.1}
  #allocation0 [shape = 'u32[]', space=smem, size = 0x4, offset = 0x4, fixed_abs, tag = 'smem constant byte address 0x4 - core index']
  #allocation1 [shape = 'u32[72,128]{1,0:T(1,128)}', space=vmem, size = 0x9000, scoped, tag = 'internal scratch']
  %s0 = inlined_call_operand.hbm [shape: bf16[16,32], index: 0, kind: input, shape index: {}]
  %s1 = inlined_call_operand.hbm [shape: bf16[32,96], index: 1, kind: input, shape index: {}]
  %s2 = inlined_call_operand.vmem [shape: f32[1,96], index: 2, kind: input, shape index: {}]
  %s3 = inlined_call_operand.hbm [shape: bf16[4,8,32], index: 3, kind: input, shape index: {}]
  %s4 = inlined_call_operand.vmem [shape: f32[1,32], index: 4, kind: input, shape index: {}]
  %s5 = inlined_call_operand.hbm [shape: f32[16,32], index: 5, kind: output, shape index: {}]
  %s6 = sld [smem:[#allocation0]]
  $region65: #{tpu_custom_call.1} parent=0
    _
  %s8 = ssub.s32 1, %s6
  %s9 = scalar_select 0, %s8, %s6
  $region1: #{tpu_custom_call.1} parent=0
    #allocation2 [shape = 'u8[4096]{0}', space=vmem, size = 0x1000, scoped, tag = 'input window, operand 0']
    #allocation3 [shape = 's32[2]{0}', space=sflag, size = 0x8, scoped, tag = 'scoped memory for tpu_custom_call.1']
    #allocation4 [shape = 's32[2]{0}', space=sflag, size = 0x8, scoped, tag = 'scoped memory for tpu_custom_call.1']
    #allocation5 [shape = 'u8[8192]{0}', space=vmem, size = 0x2000, scoped, tag = 'input window, operand 1, single buffered']
    #allocation6 [shape = 's32[1]{0}', space=sflag, size = 0x4, scoped, tag = 'scoped memory for tpu_custom_call.1']
    #allocation7 [shape = 'u8[8192]{0}', space=vmem, size = 0x2000, scoped, tag = 'input window, operand 3, single buffered']
    #allocation8 [shape = 'u8[8192]{0}', space=vmem, size = 0x2000, scoped, tag = 'output window, operand 0']
    %10 = vsyncpa [#allocation3], 0
    %s11 = scalar_lea.sflag [#allocation3], 1
    %12 = vsyncpa %s11, 0
    %13 = vsyncpa [#allocation6], 0
    %14 = vsyncpa [#allocation4], 0
    %s15 = scalar_lea.sflag [#allocation4], 1
    %16 = vsyncpa %s15, 0
    loop: start=0, step=1, limit=4
    $region2: #{tpu_custom_call.1} parent=1 // loop_pre_header
      _
    $region3: #{tpu_custom_call.1} parent=1 // loop_header
      %s18 = sphi 0, %s22
      %p19 = scmp.ge.s32.totalorder %s18, 4
      %s28 = sphi 0, %s30
      %s31 = sphi 0, %s28
      %s32 = sphi 0, %s31
      %s48 = sphi 0, %s32
      %s52 = sphi 0, %s52
      %s54 = sphi 0, %s52
      %s55 = sphi 0, %s54
      %s69 = sphi 0, %s55
      %s73 = sphi 0, %s73
      %s75 = sphi 0, %s73
      %s76 = sphi 0, %s75
      %s90 = sphi 0, %s76
      %s94 = sphi 0, %s94
      %s96 = sphi 0, %s94
      %s97 = sphi 0, %s96
      %s111 = sphi 0, %s97
      %s115 = sphi 0, %s115
      %s117 = sphi 0, %s115
      %s118 = sphi 0, %s117
      %s132 = sphi 0, %s118
      %s138 = sphi 0, %s140
      %s141 = sphi 0, %s138
      %s142 = sphi 0, %s141
      %s158 = sphi 0, %s142
    $region4: #{tpu_custom_call.1} parent=1 // loop_header_branch
      %21 = sbr.rel (%p19) target = $region8
    $region5: #{tpu_custom_call.1} parent=1 // loop_body
      %s23 = ssub.s32 %s18, 1
      %s24 = ssub.s32 %s18, 2
      %s25 = sadd.s32 %s18, 1
      %s26 = ssub.s32 %s18, %s25
      %p27 = scmp.eq.s32.totalorder %s26, 0
      %s29 = sadd.s32 %s28, 1
      %s30 = scalar_select %p27, %s28, %s29
      %p33 = pneg %p27
      %p34 = scmp.eq.s32.totalorder %s18, 1
      %p35 = por %p33, %p34
      %p36 = scmp.ne.s32.totalorder %s28, %s31
      %p37 = scmp.eq.s32.totalorder %s18, 0
      %p38 = por %p36, %p37
      %p39 = scmp.ne.s32.totalorder %s28, %s31
      %p40 = scmp.eq.s32.totalorder %s23, 1
      %p41 = por %p39, %p40
      %p42 = scmp.ne.s32.totalorder %s31, %s32
      %p43 = scmp.eq.s32.totalorder %s23, 0
      %p44 = por %p42, %p43
      %p45 = scmp.ne.s32.totalorder %s31, %s32
      %p46 = scmp.eq.s32.totalorder %s24, 1
      %p47 = por %p45, %p46
      %p49 = scmp.ne.s32.totalorder %s32, %s48
      %p50 = scmp.eq.s32.totalorder %s24, 0
      %p51 = por %p49, %p50
      %s53 = sadd.s32 %s52, 1
      %p56 = scmp.eq.s32.totalorder %s18, 1
      %p57 = scmp.ne.s32.totalorder %s52, %s54
      %p58 = scmp.eq.s32.totalorder %s18, 0
      %p59 = por %p57, %p58
      %p60 = scmp.ne.s32.totalorder %s52, %s54
      %p61 = scmp.eq.s32.totalorder %s23, 1
      %p62 = por %p60, %p61
      %p63 = scmp.ne.s32.totalorder %s54, %s55
      %p64 = scmp.eq.s32.totalorder %s23, 0
      %p65 = por %p63, %p64
      %p66 = scmp.ne.s32.totalorder %s54, %s55
      %p67 = scmp.eq.s32.totalorder %s24, 1
      %p68 = por %p66, %p67
      %p70 = scmp.ne.s32.totalorder %s55, %s69
      %p71 = scmp.eq.s32.totalorder %s24, 0
      %p72 = por %p70, %p71
      %s74 = sadd.s32 %s73, 1
      %p77 = scmp.eq.s32.totalorder %s18, 1
      %p78 = scmp.ne.s32.totalorder %s73, %s75
      %p79 = scmp.eq.s32.totalorder %s18, 0
      %p80 = por %p78, %p79
      %p81 = scmp.ne.s32.totalorder %s73, %s75
      %p82 = scmp.eq.s32.totalorder %s23, 1
      %p83 = por %p81, %p82
      %p84 = scmp.ne.s32.totalorder %s75, %s76
      %p85 = scmp.eq.s32.totalorder %s23, 0
      %p86 = por %p84, %p85
      %p87 = scmp.ne.s32.totalorder %s75, %s76
      %p88 = scmp.eq.s32.totalorder %s24, 1
      %p89 = por %p87, %p88
      %p91 = scmp.ne.s32.totalorder %s76, %s90
      %p92 = scmp.eq.s32.totalorder %s24, 0
      %p93 = por %p91, %p92
      %s95 = sadd.s32 %s94, 1
      %p98 = scmp.eq.s32.totalorder %s18, 1
      %p99 = scmp.ne.s32.totalorder %s94, %s96
      %p100 = scmp.eq.s32.totalorder %s18, 0
      %p101 = por %p99, %p100
      %p102 = scmp.ne.s32.totalorder %s94, %s96
      %p103 = scmp.eq.s32.totalorder %s23, 1
      %p104 = por %p102, %p103
      %p105 = scmp.ne.s32.totalorder %s96, %s97
      %p106 = scmp.eq.s32.totalorder %s23, 0
      %p107 = por %p105, %p106
      %p108 = scmp.ne.s32.totalorder %s96, %s97
      %p109 = scmp.eq.s32.totalorder %s24, 1
      %p110 = por %p108, %p109
      %p112 = scmp.ne.s32.totalorder %s97, %s111
      %p113 = scmp.eq.s32.totalorder %s24, 0
      %p114 = por %p112, %p113
      %s116 = sadd.s32 %s115, 1
      %p119 = scmp.eq.s32.totalorder %s18, 1
      %p120 = scmp.ne.s32.totalorder %s115, %s117
      %p121 = scmp.eq.s32.totalorder %s18, 0
      %p122 = por %p120, %p121
      %p123 = scmp.ne.s32.totalorder %s115, %s117
      %p124 = scmp.eq.s32.totalorder %s23, 1
      %p125 = por %p123, %p124
      %p126 = scmp.ne.s32.totalorder %s117, %s118
      %p127 = scmp.eq.s32.totalorder %s23, 0
      %p128 = por %p126, %p127
      %p129 = scmp.ne.s32.totalorder %s117, %s118
      %p130 = scmp.eq.s32.totalorder %s24, 1
      %p131 = por %p129, %p130
      %p133 = scmp.ne.s32.totalorder %s118, %s132
      %p134 = scmp.eq.s32.totalorder %s24, 0
      %p135 = por %p133, %p134
      %s136 = ssub.s32 %s18, %s25
      %p137 = scmp.eq.s32.totalorder %s136, 0
      %s139 = sadd.s32 %s138, 1
      %s140 = scalar_select %p137, %s138, %s139
      %p143 = pneg %p137
      %p144 = scmp.eq.s32.totalorder %s18, 1
      %p145 = por %p143, %p144
      %p146 = scmp.ne.s32.totalorder %s138, %s141
      %p147 = scmp.eq.s32.totalorder %s18, 0
      %p148 = por %p146, %p147
      %p149 = scmp.ne.s32.totalorder %s138, %s141
      %p150 = scmp.eq.s32.totalorder %s23, 1
      %p151 = por %p149, %p150
      %p152 = scmp.ne.s32.totalorder %s141, %s142
      %p153 = scmp.eq.s32.totalorder %s23, 0
      %p154 = por %p152, %p153
      %p155 = scmp.ne.s32.totalorder %s141, %s142
      %p156 = scmp.eq.s32.totalorder %s24, 1
      %p157 = por %p155, %p156
      %p159 = scmp.ne.s32.totalorder %s142, %s158
      %p160 = scmp.eq.s32.totalorder %s24, 0
      %p161 = por %p159, %p160
      %p162 = scmp.le.s32.totalorder 1, %s18
      %p163 = scmp.lt.s32.totalorder %s18, 3
      %p164 = pnand %p162, %p163
      %p165 = pneg %p164
      // Predicated region
      $region9: #{tpu_custom_call.1} parent=5 // pred_check
        _
      $region10: #{tpu_custom_call.1} parent=5 // pred_check_branch
        %167 = sbr.rel (%p164) target = $region12
      $region11: #{tpu_custom_call.1} parent=5 // pred_region
        %s168 = ssub.s32 %s18, 1
        // Predicated region
        $region13: #{tpu_custom_call.1} parent=11 // pred_check
          %p169 = pneg %p65
        $region14: #{tpu_custom_call.1} parent=11 // pred_check_branch
          %171 = sbr.rel (%p169) target = $region16
        $region15: #{tpu_custom_call.1} parent=11 // pred_region
          %173 = vsyncadd [#allocation6], 0
          %s174 = sshll.u32 %s1, 4
          %s175 = int_to_ptr.hbm [resolvable:$true] %s174
          %s176 = sshll.u32 [#allocation5], 4
          %s177 = int_to_ptr.vmem [resolvable:$true] %s176
          %182 = dma.hbm_to_vmem [thread:$0]  %s175, 256, %s177, [#allocation6], 64, 64, 4
        $region16: #{tpu_custom_call.1} parent=11 // pred_fallthru
          _
        // Predicated region
        $region17: #{tpu_custom_call.1} parent=11 // pred_check
          %p183 = pneg %p86
        $region18: #{tpu_custom_call.1} parent=11 // pred_check_branch
          %185 = sbr.rel (%p183) target = $region20
        $region19: #{tpu_custom_call.1} parent=11 // pred_region
          _
        $region20: #{tpu_custom_call.1} parent=11 // pred_fallthru
          _
        // Predicated region
        $region21: #{tpu_custom_call.1} parent=11 // pred_check
          %p186 = pneg %p107
        $region22: #{tpu_custom_call.1} parent=11 // pred_check_branch
          %188 = sbr.rel (%p186) target = $region24
        $region23: #{tpu_custom_call.1} parent=11 // pred_region
          %190 = vsyncadd [#allocation6], 0
          %s191 = sshll.u32 %s3, 4
          %s192 = int_to_ptr.hbm [resolvable:$true] %s191
          %s193 = sshll.u32 [#allocation7], 4
          %s194 = int_to_ptr.vmem [resolvable:$true] %s193
          %199 = dma.hbm_to_vmem [thread:$0]  %s192, 256, %s194, [#allocation6], 64, 64, 4
        $region24: #{tpu_custom_call.1} parent=11 // pred_fallthru
          _
        // Predicated region
        $region25: #{tpu_custom_call.1} parent=11 // pred_check
          %p200 = pneg %p128
        $region26: #{tpu_custom_call.1} parent=11 // pred_check_branch
          %202 = sbr.rel (%p200) target = $region28
        $region27: #{tpu_custom_call.1} parent=11 // pred_region
          _
        $region28: #{tpu_custom_call.1} parent=11 // pred_fallthru
          _
      $region12: #{tpu_custom_call.1} parent=5 // pred_fallthru
        _
      %p203 = scmp.lt.s32.totalorder %s18, 2
      // Predicated region
      $region29: #{tpu_custom_call.1} parent=5 // pred_check
        %p204 = pneg %p203
      $region30: #{tpu_custom_call.1} parent=5 // pred_check_branch
        %206 = sbr.rel (%p204) target = $region32
      $region31: #{tpu_custom_call.1} parent=5 // pred_region
        // Predicated region
        $region33: #{tpu_custom_call.1} parent=31 // pred_check
          %p207 = pneg %p38
        $region34: #{tpu_custom_call.1} parent=31 // pred_check_branch
          %209 = sbr.rel (%p207) target = $region36
        $region35: #{tpu_custom_call.1} parent=31 // pred_region
          %s210 = sand.u32 %s28, 1
          %s211 = scalar_lea.sflag [#allocation3], %s210
          %s212 = sand.u32 %s28, 1
          %s213 = smul.addr %s212, 4
          %s214 = scalar_lea.vmem [#allocation2], %s213
          %216 = vsyncadd %s211, 0
          %s217 = smul.addr %s18, 4
          %s218 = scalar_lea.hbm %s0, %s217
          %s220 = sshll.u32 %s218, 4
          %s221 = int_to_ptr.hbm [resolvable:$true] %s220
          %s222 = sshll.u32 %s214, 4
          %s223 = int_to_ptr.vmem [resolvable:$true] %s222
          %225 = dma.hbm_to_vmem [thread:$0]  %s221, 64, %s223, %s211
        $region36: #{tpu_custom_call.1} parent=31 // pred_fallthru
          _
      $region32: #{tpu_custom_call.1} parent=5 // pred_fallthru
        _
      %p226 = scmp.le.s32.totalorder 1, %s18
      %p227 = scmp.lt.s32.totalorder %s18, 3
      %p228 = pnand %p226, %p227
      %p229 = pneg %p228
      // Predicated region
      $region37: #{tpu_custom_call.1} parent=5 // pred_check
        _
      $region38: #{tpu_custom_call.1} parent=5 // pred_check_branch
        %231 = sbr.rel (%p228) target = $region40
      $region39: #{tpu_custom_call.1} parent=5 // pred_region
        %s232 = ssub.s32 %s18, 1
        %s233 = sand.u32 %s31, 1
        %s234 = scalar_lea.sflag [#allocation3], %s233
        %s235 = sand.u32 %s31, 1
        %s236 = smul.addr %s235, 4
        %s237 = scalar_lea.vmem [#allocation2], %s236
        // Predicated region
        $region41: #{tpu_custom_call.1} parent=39 // pred_check
          %p238 = pneg %p44
        $region42: #{tpu_custom_call.1} parent=39 // pred_check_branch
          %240 = sbr.rel (%p238) target = $region44
        $region43: #{tpu_custom_call.1} parent=39 // pred_region
          %242 = dma.done %s234, 64
        $region44: #{tpu_custom_call.1} parent=39 // pred_fallthru
          _
        // Predicated region
        $region45: #{tpu_custom_call.1} parent=39 // pred_check
          %p243 = pneg %p65
        $region46: #{tpu_custom_call.1} parent=39 // pred_check_branch
          %245 = sbr.rel (%p243) target = $region48
        $region47: #{tpu_custom_call.1} parent=39 // pred_region
          %247 = dma.done [#allocation6], 256
        $region48: #{tpu_custom_call.1} parent=39 // pred_fallthru
          _
        // Predicated region
        $region49: #{tpu_custom_call.1} parent=39 // pred_check
          %p248 = pneg %p107
        $region50: #{tpu_custom_call.1} parent=39 // pred_check_branch
          %250 = sbr.rel (%p248) target = $region52
        $region51: #{tpu_custom_call.1} parent=39 // pred_region
          %252 = dma.done [#allocation6], 256
        $region52: #{tpu_custom_call.1} parent=39 // pred_fallthru
          _
        %s253 = sand.u32 %s31, 1
        %s254 = scalar_lea.sflag [#allocation3], %s253
        %s255 = sand.u32 %s31, 1
        %s256 = smul.addr %s255, 4
        %s257 = scalar_lea.vmem [#allocation2], %s256
        %p258 = pneg %p44
        %p259 = pneg %p41
        %p260 = pneg %p65
        %p261 = pneg %p62
        %p262 = pneg %p86
        %p263 = pneg %p83
        %p264 = pneg %p107
        %p265 = pneg %p104
        %p266 = pneg %p128
        %p267 = pneg %p125
        %p268 = pneg %p154
        %p269 = pneg %p151
        %s270 = sand.u32 %s141, 1
        %s271 = scalar_lea.sflag [#allocation4], %s270
        %s272 = sand.u32 %s141, 1
        %s273 = smul.addr %s272, 8
        %s274 = scalar_lea.vmem [#allocation8], %s273
        %v276 = vld [vmem:[%s237] sm:$0xf]
        %v277 = vld [vmem:[#allocation5] sm:$0xf]
        %v278 = vld [vmem:[#allocation5 + $0x4] sm:$0xf]
        %v279 = vld [vmem:[#allocation5 + $0x8] sm:$0xf]
        %v280 = vld [vmem:[#allocation5 + $0xc] sm:$0xf]
        %v281 = vld [vmem:[%s2] sm:$0x1]
        %v283 = vperm.slane %v281, 0
        %v289 = vunpack.c.l.b16 %v277
        %v290 = vunpack.c.l.b16 %v278
        %v291 = vunpack.c.l.b16 %v279
        %v292 = vunpack.c.l.b16 %v280
        %v293 = vpack.c.b16 %v290, %v289
        %v294 = vpack.c.b16 %v292, %v291
        %vm297 = vcmask 261120
        %v299 = vsel %vm297, %v276, 0
        %301 = vmatpush.bf16.msra.mxu0 0
        %302 = vmatpush.bf16.msra.mxu0 0
        %303 = vmatpush.bf16.msra.mxu0 0
        %304 = vmatpush.bf16.msra.mxu0 0
        %305 = vmatpush.bf16.msra.mxu0 0
        %306 = vmatpush.bf16.msra.mxu0 0
        %307 = vmatpush.bf16.msra.mxu0 %v294
        %308 = vmatpush.bf16.msra.mxu0 %v293
        %309 = vmatmul.bf16.gmra.mxu0 %v299
        %v310 = vpop.f32.mrf.mxu0
        %v311 = vadd.f32 %v283, %v310
        %v312 = vpop.f32.mrf.mxu0
        %313 = vdwg.mxu0
        %v314 = vpack.c.bf16 %v311, %v311
        %v316 = vunpack.c.l.b16 %v314
        %v317 = vpack.c.b16 %v316, %v316
        %318 = vrot.lane.b32.xlu0 %v317, 96
        %v319 = vpop.permute.xlu0 %318
        %vm320 = vcmask 64512
        %v322 = vsel %vm320, %v314, 0
        %v325 = vsel %vm320, %v319, 0
        %327 = vmatpush.bf16.xpose.msra.mxu0 0
        %328 = vmatpush.bf16.xpose.msra.mxu0 0
        %329 = vmatpush.bf16.xpose.msra.mxu0 0
        %330 = vmatpush.bf16.xpose.msra.mxu0 0
        %331 = vmatpush.bf16.xpose.msra.mxu0 0
        %332 = vmatpush.bf16.xpose.msra.mxu0 0
        %333 = vmatpush.bf16.xpose.msra.mxu0 0
        %334 = vmatpush.bf16.xpose.msra.mxu0 %v325
        %335 = vmatmul.bf16.gmra.mxu0 %v322
        %v336 = vpop.f32.mrf.mxu0
        %v337 = vadd.f32 0.0, %v336
        %v338 = vpop.f32.mrf.mxu0
        %339 = vdwg.mxu0
        %v340 = vsel %vm320, %v337, -inf
        %341 = vmax.xlane.f32.xlu0 %v340
        %v342 = vpop.xlane.xlu0 %341
        %v343 = vsub.f32 %v337, %v342
        %v344 = vmul.f32 %v343, 1.442695
        %v345 = vpow.pop %v344
        %v346 = vsel %vm320, %v345, 0.0
        %347 = vadd.xlane.f32.xlu0 %v346
        %v348 = vpop.xlane.xlu0 %347
        %v349 = vrcp.pop %v348
        %v350 = vmul.f32 %v345, %v349
        %v351 = vpack.c.bf16 %v350, %v350
        %352 = vrot.lane.b32.xlu0 %v317, 64
        %v353 = vpop.permute.xlu0 %352
        %v355 = vsel %vm320, %v351, 0
        %vm357 = vcmask 1043456
        %v359 = vsel %vm357, %v353, 0
        %361 = vmatpush.bf16.msra.mxu0 0
        %362 = vmatpush.bf16.msra.mxu0 0
        %363 = vmatpush.bf16.msra.mxu0 0
        %364 = vmatpush.bf16.msra.mxu0 0
        %365 = vmatpush.bf16.msra.mxu0 0
        %366 = vmatpush.bf16.msra.mxu0 0
        %367 = vmatpush.bf16.msra.mxu0 0
        %368 = vmatpush.bf16.msra.mxu0 %v359
        %369 = vmatmul.bf16.gmra.mxu0 %v355
        %v370 = vpop.f32.mrf.mxu0
        %v371 = vadd.f32 0.0, %v370
        %v372 = vpop.f32.mrf.mxu0
        %373 = vdwg.mxu0
        %v374 = vpack.c.bf16 %v371, %v371
        %v375 = vld [vmem:[#allocation7] sm:$0xf]
        %376 = vrot.lane.b32.xlu0 %v317, 120
        %v377 = vpop.permute.xlu0 %376
        %378 = vrot.lane.b32.xlu0 %v317, 88
        %v379 = vpop.permute.xlu0 %378
        %v381 = vsel %vm320, %v377, 0
        %v384 = vsel %vm320, %v379, 0
        %386 = vmatpush.bf16.xpose.msra.mxu0 0
        %387 = vmatpush.bf16.xpose.msra.mxu0 0
        %388 = vmatpush.bf16.xpose.msra.mxu0 0
        %389 = vmatpush.bf16.xpose.msra.mxu0 0
        %390 = vmatpush.bf16.xpose.msra.mxu0 0
        %391 = vmatpush.bf16.xpose.msra.mxu0 0
        %392 = vmatpush.bf16.xpose.msra.mxu0 0
        %393 = vmatpush.bf16.xpose.msra.mxu0 %v384
        %394 = vmatmul.bf16.gmra.mxu0 %v381
        %v395 = vpop.f32.mrf.mxu0
        %v396 = vadd.f32 0.0, %v395
        %v397 = vpop.f32.mrf.mxu0
        %398 = vdwg.mxu0
        %v399 = vsel %vm320, %v396, -inf
        %400 = vmax.xlane.f32.xlu0 %v399
        %v401 = vpop.xlane.xlu0 %400
        %v402 = vsub.f32 %v396, %v401
        %v403 = vmul.f32 %v402, 1.442695
        %v404 = vpow.pop %v403
        %v405 = vsel %vm320, %v404, 0.0
        %406 = vadd.xlane.f32.xlu0 %v405
        %v407 = vpop.xlane.xlu0 %406
        %v408 = vrcp.pop %v407
        %v409 = vmul.f32 %v404, %v408
        %v410 = vpack.c.bf16 %v409, %v409
        %411 = vrot.lane.b32.xlu0 %v317, 56
        %v412 = vpop.permute.xlu0 %411
        %v414 = vsel %vm320, %v410, 0
        %v417 = vsel %vm357, %v412, 0
        %419 = vmatpush.bf16.msra.mxu0 0
        %420 = vmatpush.bf16.msra.mxu0 0
        %421 = vmatpush.bf16.msra.mxu0 0
        %422 = vmatpush.bf16.msra.mxu0 0
        %423 = vmatpush.bf16.msra.mxu0 0
        %424 = vmatpush.bf16.msra.mxu0 0
        %425 = vmatpush.bf16.msra.mxu0 0
        %426 = vmatpush.bf16.msra.mxu0 %v417
        %427 = vmatmul.bf16.gmra.mxu0 %v414
        %v428 = vpop.f32.mrf.mxu0
        %v429 = vadd.f32 0.0, %v428
        %v430 = vpop.f32.mrf.mxu0
        %431 = vdwg.mxu0
        %v432 = vpack.c.bf16 %v429, %v429
        %s433 = scalar_lea.vmem [#allocation7], 4
        %v434 = vld [vmem:[%s433] sm:$0xf]
        %v436 = vsel %vm320, %v432, 0
        %v439 = vsel %vm357, %v434, 0
        %441 = vmatpush.bf16.msra.mxu0 0
        %442 = vmatpush.bf16.msra.mxu0 0
        %443 = vmatpush.bf16.msra.mxu0 0
        %444 = vmatpush.bf16.msra.mxu0 0
        %445 = vmatpush.bf16.msra.mxu0 0
        %446 = vmatpush.bf16.msra.mxu0 0
        %447 = vmatpush.bf16.msra.mxu0 0
        %448 = vmatpush.bf16.msra.mxu0 %v439
        %449 = vmatmul.bf16.gmra.mxu0 %v436
        %v450 = vpop.f32.mrf.mxu0
        %v451 = vadd.f32 0.0, %v450
        %v452 = vpop.f32.mrf.mxu0
        %453 = vdwg.mxu0
        %v455 = vsel %vm320, %v374, 0
        %v458 = vsel %vm357, %v375, 0
        %460 = vmatpush.bf16.msra.mxu0 0
        %461 = vmatpush.bf16.msra.mxu0 0
        %462 = vmatpush.bf16.msra.mxu0 0
        %463 = vmatpush.bf16.msra.mxu0 0
        %464 = vmatpush.bf16.msra.mxu0 0
        %465 = vmatpush.bf16.msra.mxu0 0
        %466 = vmatpush.bf16.msra.mxu0 0
        %467 = vmatpush.bf16.msra.mxu0 %v458
        %468 = vmatmul.bf16.gmra.mxu0 %v455
        %v469 = vpop.f32.mrf.mxu0
        %v470 = vadd.f32 %v451, %v469
        %v471 = vpop.f32.mrf.mxu0
        %472 = vdwg.mxu0
        %473 = vrot.lane.b32.xlu0 %v317, 112
        %v474 = vpop.permute.xlu0 %473
        %475 = vrot.lane.b32.xlu0 %v317, 80
        %v476 = vpop.permute.xlu0 %475
        %v478 = vsel %vm320, %v474, 0
        %v481 = vsel %vm320, %v476, 0
        %483 = vmatpush.bf16.xpose.msra.mxu0 0
        %484 = vmatpush.bf16.xpose.msra.mxu0 0
        %485 = vmatpush.bf16.xpose.msra.mxu0 0
        %486 = vmatpush.bf16.xpose.msra.mxu0 0
        %487 = vmatpush.bf16.xpose.msra.mxu0 0
        %488 = vmatpush.bf16.xpose.msra.mxu0 0
        %489 = vmatpush.bf16.xpose.msra.mxu0 0
        %490 = vmatpush.bf16.xpose.msra.mxu0 %v481
        %491 = vmatmul.bf16.gmra.mxu0 %v478
        %v492 = vpop.f32.mrf.mxu0
        %v493 = vadd.f32 0.0, %v492
        %v494 = vpop.f32.mrf.mxu0
        %495 = vdwg.mxu0
        %v496 = vsel %vm320, %v493, -inf
        %497 = vmax.xlane.f32.xlu0 %v496
        %v498 = vpop.xlane.xlu0 %497
        %v499 = vsub.f32 %v493, %v498
        %v500 = vmul.f32 %v499, 1.442695
        %v501 = vpow.pop %v500
        %v502 = vsel %vm320, %v501, 0.0
        %503 = vadd.xlane.f32.xlu0 %v502
        %v504 = vpop.xlane.xlu0 %503
        %v505 = vrcp.pop %v504
        %v506 = vmul.f32 %v501, %v505
        %v507 = vpack.c.bf16 %v506, %v506
        %508 = vrot.lane.b32.xlu0 %v317, 48
        %v509 = vpop.permute.xlu0 %508
        %v511 = vsel %vm320, %v507, 0
        %v514 = vsel %vm357, %v509, 0
        %516 = vmatpush.bf16.msra.mxu0 0
        %517 = vmatpush.bf16.msra.mxu0 0
        %518 = vmatpush.bf16.msra.mxu0 0
        %519 = vmatpush.bf16.msra.mxu0 0
        %520 = vmatpush.bf16.msra.mxu0 0
        %521 = vmatpush.bf16.msra.mxu0 0
        %522 = vmatpush.bf16.msra.mxu0 0
        %523 = vmatpush.bf16.msra.mxu0 %v514
        %524 = vmatmul.bf16.gmra.mxu0 %v511
        %v525 = vpop.f32.mrf.mxu0
        %v526 = vadd.f32 0.0, %v525
        %v527 = vpop.f32.mrf.mxu0
        %528 = vdwg.mxu0
        %v529 = vpack.c.bf16 %v526, %v526
        %s530 = scalar_lea.vmem [#allocation7], 8
        %v531 = vld [vmem:[%s530] sm:$0xf]
        %v533 = vsel %vm320, %v529, 0
        %v536 = vsel %vm357, %v531, 0
        %538 = vmatpush.bf16.msra.mxu0 0
        %539 = vmatpush.bf16.msra.mxu0 0
        %540 = vmatpush.bf16.msra.mxu0 0
        %541 = vmatpush.bf16.msra.mxu0 0
        %542 = vmatpush.bf16.msra.mxu0 0
        %543 = vmatpush.bf16.msra.mxu0 0
        %544 = vmatpush.bf16.msra.mxu0 0
        %545 = vmatpush.bf16.msra.mxu0 %v536
        %546 = vmatmul.bf16.gmra.mxu0 %v533
        %v547 = vpop.f32.mrf.mxu0
        %v548 = vadd.f32 0.0, %v547
        %v549 = vpop.f32.mrf.mxu0
        %550 = vdwg.mxu0
        %v551 = vadd.f32 %v470, %v548
        %552 = vrot.lane.b32.xlu0 %v317, 104
        %v553 = vpop.permute.xlu0 %552
        %554 = vrot.lane.b32.xlu0 %v317, 72
        %v555 = vpop.permute.xlu0 %554
        %v557 = vsel %vm320, %v553, 0
        %v560 = vsel %vm320, %v555, 0
        %562 = vmatpush.bf16.xpose.msra.mxu0 0
        %563 = vmatpush.bf16.xpose.msra.mxu0 0
        %564 = vmatpush.bf16.xpose.msra.mxu0 0
        %565 = vmatpush.bf16.xpose.msra.mxu0 0
        %566 = vmatpush.bf16.xpose.msra.mxu0 0
        %567 = vmatpush.bf16.xpose.msra.mxu0 0
        %568 = vmatpush.bf16.xpose.msra.mxu0 0
        %569 = vmatpush.bf16.xpose.msra.mxu0 %v560
        %570 = vmatmul.bf16.gmra.mxu0 %v557
        %v571 = vpop.f32.mrf.mxu0
        %v572 = vadd.f32 0.0, %v571
        %v573 = vpop.f32.mrf.mxu0
        %574 = vdwg.mxu0
        %v575 = vsel %vm320, %v572, -inf
        %576 = vmax.xlane.f32.xlu0 %v575
        %v577 = vpop.xlane.xlu0 %576
        %v578 = vsub.f32 %v572, %v577
        %v579 = vmul.f32 %v578, 1.442695
        %v580 = vpow.pop %v579
        %v581 = vsel %vm320, %v580, 0.0
        %582 = vadd.xlane.f32.xlu0 %v581
        %v583 = vpop.xlane.xlu0 %582
        %v584 = vrcp.pop %v583
        %v585 = vmul.f32 %v580, %v584
        %v586 = vpack.c.bf16 %v585, %v585
        %587 = vrot.lane.b32.xlu0 %v317, 40
        %v588 = vpop.permute.xlu0 %587
        %v590 = vsel %vm320, %v586, 0
        %v593 = vsel %vm357, %v588, 0
        %595 = vmatpush.bf16.msra.mxu0 0
        %596 = vmatpush.bf16.msra.mxu0 0
        %597 = vmatpush.bf16.msra.mxu0 0
        %598 = vmatpush.bf16.msra.mxu0 0
        %599 = vmatpush.bf16.msra.mxu0 0
        %600 = vmatpush.bf16.msra.mxu0 0
        %601 = vmatpush.bf16.msra.mxu0 0
        %602 = vmatpush.bf16.msra.mxu0 %v593
        %603 = vmatmul.bf16.gmra.mxu0 %v590
        %v604 = vpop.f32.mrf.mxu0
        %v605 = vadd.f32 0.0, %v604
        %v606 = vpop.f32.mrf.mxu0
        %607 = vdwg.mxu0
        %v608 = vpack.c.bf16 %v605, %v605
        %s609 = scalar_lea.vmem [#allocation7], 12
        %v610 = vld [vmem:[%s609] sm:$0xf]
        %v612 = vsel %vm320, %v608, 0
        %v615 = vsel %vm357, %v610, 0
        %617 = vmatpush.bf16.msra.mxu0 0
        %618 = vmatpush.bf16.msra.mxu0 0
        %619 = vmatpush.bf16.msra.mxu0 0
        %620 = vmatpush.bf16.msra.mxu0 0
        %621 = vmatpush.bf16.msra.mxu0 0
        %622 = vmatpush.bf16.msra.mxu0 0
        %623 = vmatpush.bf16.msra.mxu0 0
        %624 = vmatpush.bf16.msra.mxu0 %v615
        %625 = vmatmul.bf16.gmra.mxu0 %v612
        %v626 = vpop.f32.mrf.mxu0
        %v627 = vadd.f32 0.0, %v626
        %v628 = vpop.f32.mrf.mxu0
        %629 = vdwg.mxu0
        %v630 = vadd.f32 %v551, %v627
        %v631 = vld [vmem:[%s4] sm:$0x1]
        %v633 = vperm.slane %v631, 0
        %v635 = vadd.f32 %v630, %v633
        %636 = vst.msk [vmem:[%s274] sm:$0xff] %vm297, %v635
        %s637 = sand.u32 %s141, 1
        %s638 = scalar_lea.sflag [#allocation4], %s637
        %s639 = sand.u32 %s141, 1
        %s640 = smul.addr %s639, 8
        %s641 = scalar_lea.vmem [#allocation8], %s640
        // Predicated region
        $region53: #{tpu_custom_call.1} parent=39 // pred_check
          %p642 = pneg %p151
        $region54: #{tpu_custom_call.1} parent=39 // pred_check_branch
          %644 = sbr.rel (%p642) target = $region56
        $region55: #{tpu_custom_call.1} parent=39 // pred_region
          %646 = vsyncadd %s638, 0
          %s647 = smul.addr %s23, 8
          %s648 = scalar_lea.hbm %s5, %s647
          %s650 = sshll.u32 %s641, 4
          %s651 = int_to_ptr.vmem [resolvable:$true] %s650
          %s652 = sshll.u32 %s648, 4
          %s653 = int_to_ptr.hbm [resolvable:$true] %s652
          %655 = dma.vmem_to_hbm [thread:$0]  %s651, 128, %s653, %s638
        $region56: #{tpu_custom_call.1} parent=39 // pred_fallthru
          _
      $region40: #{tpu_custom_call.1} parent=5 // pred_fallthru
        _
      %p656 = scmp.le.s32.totalorder 2, %s18
      // Predicated region
      $region57: #{tpu_custom_call.1} parent=5 // pred_check
        %p657 = pneg %p656
      $region58: #{tpu_custom_call.1} parent=5 // pred_check_branch
        %659 = sbr.rel (%p657) target = $region60
      $region59: #{tpu_custom_call.1} parent=5 // pred_region
        %s660 = ssub.s32 %s18, 2
        // Predicated region
        $region61: #{tpu_custom_call.1} parent=59 // pred_check
          %p661 = pneg %p157
        $region62: #{tpu_custom_call.1} parent=59 // pred_check_branch
          %663 = sbr.rel (%p661) target = $region64
        $region63: #{tpu_custom_call.1} parent=59 // pred_region
          %s664 = sand.u32 %s142, 1
          %s665 = scalar_lea.sflag [#allocation4], %s664
          %s666 = sand.u32 %s142, 1
          %s667 = smul.addr %s666, 8
          %s668 = scalar_lea.vmem [#allocation8], %s667
          %670 = dma.done %s665, 128
        $region64: #{tpu_custom_call.1} parent=59 // pred_fallthru
          _
      $region60: #{tpu_custom_call.1} parent=5 // pred_fallthru
        _
    $region6: #{tpu_custom_call.1} parent=1 // loop_footer
      %s22 = sadd.s32 1, %s18
    $region7: #{tpu_custom_call.1} parent=1 // loop_footer_branch
      %17 = sbr.rel target = $region3
    $region8: #{tpu_custom_call.1} parent=1 // loop_exit
      _
    %671 = vsyncpa [#allocation3], 1
    %s672 = scalar_lea.sflag [#allocation3], 1
    %673 = vsyncpa %s672, 1
    %674 = vsyncpa [#allocation6], 1
    %675 = vsyncpa [#allocation4], 1
    %s676 = scalar_lea.sflag [#allocation4], 1
    %677 = vsyncpa %s676, 1

</llo_original>
